<compile_context>
chip_gen: v7x
topology: tpu7x:2x2x1
jax: 0.10.0
libtpu: 0.0.40
codegen_flags: <defaults>
</compile_context>

<pallas_src>
import functools

import jax
import jax.numpy as jnp
import numpy as np
from jax.experimental import pallas as pl
from jax.experimental.pallas import tpu as pltpu


# ----------------------------- mask construction (glue, plain numpy) --------
def create_mask_i(num_i, num_o, D):
    assert num_i == D
    i = np.arange(num_i)
    o = np.arange(num_o) % (D - 1)
    return (o[:, None] >= i[None, :]).astype(np.float32)          # [num_o, num_i]


def create_mask_h(num_i, num_o, D):
    i = np.arange(num_i) % (D - 1)
    o = np.arange(num_o) % (D - 1)
    return (o[:, None] >= i[None, :]).astype(np.float32)


def create_mask_o(num_i, num_o, D):
    i = np.arange(num_i) % (D - 1)
    o = np.arange(num_o) % D
    return (o[:, None] > i[None, :]).astype(np.float32)


def create_masks(D, hs, m):
    masks = [create_mask_i(D, hs[0], D)]
    for i in range(1, len(hs)):
        masks.append(create_mask_h(hs[i - 1], hs[i], D))
    masks.append(create_mask_o(hs[-1], m * D, D))
    return masks


# ----------------------------- Pallas kernel --------------------------------
def maf_forward_kernel(u_ref, w0_ref, b0_ref, w1_ref, b1_ref,
                       wh_ref, bh_ref, x_ref, *, clamp_min, clamp_max):
    """MAF.forward in transposed layout (features on sublanes, batch on lanes).

    x[i, :] = u[i, :] * exp(clamp(alpha[i, :])) + mu[i, :],
    where (mu, alpha) = ARN(x) is recomputed every step i (autoregressive).
    """
    D, Bt = u_ref.shape            # [D, Bt]  batch tile on lanes
    u = u_ref[...]
    w0 = w0_ref[...]               # [H0, D]   masked, nn.Linear orientation
    w1 = w1_ref[...]               # [H1, H0]
    wh = wh_ref[...]               # [2D, H1]  fused (mu | alpha) head
    H0 = w0.shape[0]
    H1 = w1.shape[0]

    # Hoisted bias broadcasts: JAX does not CSE broadcast_in_dim, so doing
    # these inside the unrolled loop would re-emit them D times each.
    b0b = jnp.broadcast_to(b0_ref[...], (H0, Bt))        # lane broadcast
    b1b = jnp.broadcast_to(b1_ref[...], (H1, Bt))
    bhb = jnp.broadcast_to(bh_ref[...], (2 * D, Bt))

    row = jax.lax.broadcasted_iota(jnp.int32, (D, Bt), 0)
    x = jnp.zeros((D, Bt), jnp.float32)

    # D is small & static: unrolled Python loop -> one straight-line program.
    # NOTE: the cheap-sublane-slice assumption for mu/alpha below wants D to
    # be a multiple of 8; correctness does not depend on it.
    for i in range(D):
        if i == 0:
            # x == 0 at step 0: skip the first-layer dot entirely.
            h0 = jnp.maximum(b0b, 0.0)
        else:
            h0 = jnp.maximum(
                jnp.dot(w0, x, preferred_element_type=jnp.float32) + b0b, 0.0)
        h1 = jnp.maximum(
            jnp.dot(w1, h0, preferred_element_type=jnp.float32) + b1b, 0.0)
        # Single fused head matmul; mu / alpha split is an aligned sublane
        # slice in this layout (essentially free).
        heads = jnp.dot(wh, h1, preferred_element_type=jnp.float32) + bhb
        mu = heads[:D, :]
        a = jnp.clip(heads[D:, :], clamp_min, clamp_max)
        # Full-width epilogue over all lanes; the where keeps only row i
        # (matches x[:, i] = ... in the reference).
        x_new = u * jnp.exp(a) + mu
        x = jnp.where(row == i, x_new, x)

    x_ref[...] = x


# ----------------------------- parameters ------------------------------------
class MAFParams:
    def __init__(self, key, D, hs, clamp_min=-5.0, clamp_max=3.0):
        self.D = D
        self.hs = hs
        self.clamp_min = clamp_min
        self.clamp_max = clamp_max
        masks = create_masks(D, hs, m=2)

        ks = jax.random.split(key, 6)

        # nn.Linear-style shapes: W is [out, in]
        def init_w(k, out_f, in_f):
            bound = 1.0 / np.sqrt(in_f)
            return jax.random.uniform(k, (out_f, in_f), jnp.float32, -bound, bound)

        def init_b(k, out_f, in_f):
            bound = 1.0 / np.sqrt(in_f)
            return jax.random.uniform(k, (out_f,), jnp.float32, -bound, bound)

        # Masked weights, kept in nn.Linear [out, in] orientation (that is
        # exactly what the transposed-layout kernel wants as LHS).
        self.w0m = init_w(ks[0], hs[0], D) * jnp.asarray(masks[0])       # [H0, D]
        self.b0 = init_b(ks[1], hs[0], D)                                # [H0]
        self.w1m = init_w(ks[2], hs[1], hs[0]) * jnp.asarray(masks[1])   # [H1, H0]
        self.b1 = init_b(ks[3], hs[1], hs[0])                            # [H1]
        self.whm = init_w(ks[4], 2 * D, hs[1]) * jnp.asarray(masks[2])   # [2D, H1]
        self.bh = init_b(ks[5], 2 * D, hs[1])                            # [2D]

        # Column-vector biases for the kernel (broadcast across lanes/batch).
        self.b0c = self.b0.reshape(hs[0], 1)
        self.b1c = self.b1.reshape(hs[1], 1)
        self.bhc = self.bh.reshape(2 * D, 1)


# ----------------------------- pure-JAX reference ----------------------------
def maf_forward_ref(u, p: MAFParams):
    B, D = u.shape
    x = jnp.zeros_like(u)
    for i in range(D):
        h0 = jnp.maximum(x @ p.w0m.T + p.b0, 0.0)
        h1 = jnp.maximum(h0 @ p.w1m.T + p.b1, 0.0)
        heads = h1 @ p.whm.T + p.bh
        mu, al = heads[:, :D], heads[:, D:]
        a_i = jnp.clip(al[:, i], p.clamp_min, p.clamp_max)
        x = x.at[:, i].set(u[:, i] * jnp.exp(a_i) + mu[:, i])
    return x


# ----------------------------- wrapper ---------------------------------------
def maf_forward(u, p: MAFParams, *, block_b=4096, min_tiles=2,
                min_pallas_batch=128):
    B, D = u.shape

    # At tiny batch sizes the kernel is pure fixed overhead; let XLA handle it.
    if B < min_pallas_batch:
        return maf_forward_ref(u, p)

    block_b = max(256, (block_b // 256) * 256)
    if B <= 256:
        tb = B                       # full-array block (grid = 1)
    else:
        # Multiple of 256 lanes (MXU N on v6e/v7x, 2x v5e), at least 2 tiles
        # so both v7x TensorCores get work, capped by block_b.
        tb = min(block_b, max(256, (pl.cdiv(B, min_tiles) // 256) * 256))
    grid = (pl.cdiv(B, tb),)

    kernel = functools.partial(
        maf_forward_kernel, clamp_min=p.clamp_min, clamp_max=p.clamp_max)

    def rep(arr):
        # Weights/biases are tiny: replicate the full array into every tile.
        return pl.BlockSpec(arr.shape, lambda i: (0, 0))

    u_t = u.T                        # [D, B]  one-time XLA transpose outside

    x_t = pl.pallas_call(
        kernel,
        out_shape=jax.ShapeDtypeStruct((D, B), jnp.float32),
        grid=grid,
        in_specs=[
            pl.BlockSpec((D, tb), lambda i: (0, i)),      # u^T  (batch-tiled on lanes)
            rep(p.w0m), rep(p.b0c),
            rep(p.w1m), rep(p.b1c),
            rep(p.whm), rep(p.bhc),
        ],
        out_specs=pl.BlockSpec((D, tb), lambda i: (0, i)),
        compiler_params=pltpu.CompilerParams(
            dimension_semantics=("parallel",)),            # v7x: 2 TCs
    )(u_t, p.w0m, p.b0c, p.w1m, p.b1c, p.whm, p.bhc)

    return x_t.T                     # back to [B, D]


if __name__ == "__main__":
    D = 8
    hs = [32, 32]

    key = jax.random.PRNGKey(0)
    k_u, k_p = jax.random.split(key)
    params = MAFParams(k_p, D, hs)

    # B=512: grid=(2,) (both v7x cores, lane-dense tiles).
    # B=384: exercises the padded partial last tile.
    for B in (512, 384):
        u = jax.random.uniform(jax.random.fold_in(k_u, B), (B, D), jnp.float32)
        x = maf_forward(u, params)
        jax.block_until_ready(x)
        x_ref = maf_forward_ref(u, params)
        np.testing.assert_allclose(np.asarray(x), np.asarray(x_ref),
                                   rtol=1e-5, atol=1e-5)

    print("KERNEL_OK")
</pallas_src>

<mosaic_0001>
module attributes {stable_mosaic.version = 11 : i64} {
  func.func @maf_forward_kernel(%arg0: i32, %arg1: memref<8x256xf32, #tpu.memory_space<vmem>>, %arg2: memref<32x8xf32, #tpu.memory_space<vmem>>, %arg3: memref<32x1xf32, #tpu.memory_space<vmem>>, %arg4: memref<32x32xf32, #tpu.memory_space<vmem>>, %arg5: memref<32x1xf32, #tpu.memory_space<vmem>>, %arg6: memref<16x32xf32, #tpu.memory_space<vmem>>, %arg7: memref<16x1xf32, #tpu.memory_space<vmem>>, %arg8: memref<8x256xf32, #tpu.memory_space<vmem>>) attributes {dimension_semantics = [#tpu.dimension_semantics<parallel>], iteration_bounds = array<i64: 2>, scalar_prefetch = 0 : i64, scratch_operands = 0 : i64, tpu.core_type = #tpu.core_type<tc>, window_params = [{transform_indices = @transform_0, window_bounds = array<i64: 8, 256>}, {pipeline_mode = #tpu.pipeline_mode<synchronous>, transform_indices = @transform_1, window_bounds = array<i64: 32, 8>}, {pipeline_mode = #tpu.pipeline_mode<synchronous>, transform_indices = @transform_2, window_bounds = array<i64: 32, 1>}, {pipeline_mode = #tpu.pipeline_mode<synchronous>, transform_indices = @transform_3, window_bounds = array<i64: 32, 32>}, {pipeline_mode = #tpu.pipeline_mode<synchronous>, transform_indices = @transform_4, window_bounds = array<i64: 32, 1>}, {pipeline_mode = #tpu.pipeline_mode<synchronous>, transform_indices = @transform_5, window_bounds = array<i64: 16, 32>}, {pipeline_mode = #tpu.pipeline_mode<synchronous>, transform_indices = @transform_6, window_bounds = array<i64: 16, 1>}, {transform_indices = @transform_7, window_bounds = array<i64: 8, 256>}]} {
    %c0 = arith.constant 0 : index
    %c0_0 = arith.constant 0 : index
    %0 = vector.load %arg1[%c0, %c0_0] : memref<8x256xf32, #tpu.memory_space<vmem>>, vector<8x256xf32>
    %c0_1 = arith.constant 0 : index
    %c0_2 = arith.constant 0 : index
    %1 = vector.load %arg2[%c0_1, %c0_2] : memref<32x8xf32, #tpu.memory_space<vmem>>, vector<32x8xf32>
    %c0_3 = arith.constant 0 : index
    %c0_4 = arith.constant 0 : index
    %2 = vector.load %arg4[%c0_3, %c0_4] : memref<32x32xf32, #tpu.memory_space<vmem>>, vector<32x32xf32>
    %c0_5 = arith.constant 0 : index
    %c0_6 = arith.constant 0 : index
    %3 = vector.load %arg6[%c0_5, %c0_6] : memref<16x32xf32, #tpu.memory_space<vmem>>, vector<16x32xf32>
    %c0_7 = arith.constant 0 : index
    %c0_8 = arith.constant 0 : index
    %4 = vector.load %arg3[%c0_7, %c0_8] : memref<32x1xf32, #tpu.memory_space<vmem>>, vector<32x1xf32>
    %5 = vector.shape_cast %4 : vector<32x1xf32> to vector<32x1xf32>
    %6 = vector.broadcast %5 : vector<32x1xf32> to vector<32x256xf32>
    %c0_9 = arith.constant 0 : index
    %c0_10 = arith.constant 0 : index
    %7 = vector.load %arg5[%c0_9, %c0_10] : memref<32x1xf32, #tpu.memory_space<vmem>>, vector<32x1xf32>
    %8 = vector.shape_cast %7 : vector<32x1xf32> to vector<32x1xf32>
    %9 = vector.broadcast %8 : vector<32x1xf32> to vector<32x256xf32>
    %c0_11 = arith.constant 0 : index
    %c0_12 = arith.constant 0 : index
    %10 = vector.load %arg7[%c0_11, %c0_12] : memref<16x1xf32, #tpu.memory_space<vmem>>, vector<16x1xf32>
    %11 = vector.shape_cast %10 : vector<16x1xf32> to vector<16x1xf32>
    %12 = vector.broadcast %11 : vector<16x1xf32> to vector<16x256xf32>
    %13 = tpu.iota {dimensions = array<i32: 0>} : vector<8x256xi32>
    %cst = arith.constant 0.000000e+00 : f32
    %14 = vector.broadcast %cst : f32 to vector<8x256xf32>
    %cst_13 = arith.constant 0.000000e+00 : f32
    %15 = vector.broadcast %cst_13 : f32 to vector<32x256xf32>
    %16 = arith.maximumf %6, %15 : vector<32x256xf32>
    %cst_14 = arith.constant dense<0.000000e+00> : vector<32x256xf32>
    %17 = tpu.matmul %2, %16, %cst_14 {dimension_numbers = #tpu.dot_dimension_numbers<[1], [0], [0], [1], [0, 0, 1, 1], [], []>} : vector<32x32xf32>, vector<32x256xf32>, vector<32x256xf32> -> vector<32x256xf32>
    %18 = arith.addf %17, %9 : vector<32x256xf32>
    %cst_15 = arith.constant 0.000000e+00 : f32
    %19 = vector.broadcast %cst_15 : f32 to vector<32x256xf32>
    %20 = arith.maximumf %18, %19 : vector<32x256xf32>
    %cst_16 = arith.constant dense<0.000000e+00> : vector<16x256xf32>
    %21 = tpu.matmul %3, %20, %cst_16 {dimension_numbers = #tpu.dot_dimension_numbers<[1], [0], [0], [1], [0, 0, 1, 1], [], []>} : vector<16x32xf32>, vector<32x256xf32>, vector<16x256xf32> -> vector<16x256xf32>
    %22 = arith.addf %21, %12 : vector<16x256xf32>
    %23 = vector.extract_strided_slice %22 {offsets = [0, 0], sizes = [8, 256], strides = [1, 1]} : vector<16x256xf32> to vector<8x256xf32>
    %24 = vector.extract_strided_slice %22 {offsets = [8, 0], sizes = [8, 256], strides = [1, 1]} : vector<16x256xf32> to vector<8x256xf32>
    %cst_17 = arith.constant -5.000000e+00 : f32
    %cst_18 = arith.constant 3.000000e+00 : f32
    %25 = vector.broadcast %cst_17 : f32 to vector<8x256xf32>
    %26 = arith.maximumf %25, %24 : vector<8x256xf32>
    %27 = vector.broadcast %cst_18 : f32 to vector<8x256xf32>
    %28 = arith.minimumf %27, %26 : vector<8x256xf32>
    %29 = math.exp %28 : vector<8x256xf32>
    %30 = arith.mulf %0, %29 : vector<8x256xf32>
    %31 = arith.addf %30, %23 : vector<8x256xf32>
    %c0_i32 = arith.constant 0 : i32
    %32 = vector.broadcast %c0_i32 : i32 to vector<8x256xi32>
    %33 = arith.cmpi eq, %13, %32 : vector<8x256xi32>
    %34 = arith.select %33, %31, %14 : vector<8x256xi1>, vector<8x256xf32>
    %cst_19 = arith.constant dense<0.000000e+00> : vector<32x256xf32>
    %35 = tpu.matmul %1, %34, %cst_19 {dimension_numbers = #tpu.dot_dimension_numbers<[1], [0], [0], [1], [0, 0, 1, 1], [], []>} : vector<32x8xf32>, vector<8x256xf32>, vector<32x256xf32> -> vector<32x256xf32>
    %36 = arith.addf %35, %6 : vector<32x256xf32>
    %cst_20 = arith.constant 0.000000e+00 : f32
    %37 = vector.broadcast %cst_20 : f32 to vector<32x256xf32>
    %38 = arith.maximumf %36, %37 : vector<32x256xf32>
    %cst_21 = arith.constant dense<0.000000e+00> : vector<32x256xf32>
    %39 = tpu.matmul %2, %38, %cst_21 {dimension_numbers = #tpu.dot_dimension_numbers<[1], [0], [0], [1], [0, 0, 1, 1], [], []>} : vector<32x32xf32>, vector<32x256xf32>, vector<32x256xf32> -> vector<32x256xf32>
    %40 = arith.addf %39, %9 : vector<32x256xf32>
    %cst_22 = arith.constant 0.000000e+00 : f32
    %41 = vector.broadcast %cst_22 : f32 to vector<32x256xf32>
    %42 = arith.maximumf %40, %41 : vector<32x256xf32>
    %cst_23 = arith.constant dense<0.000000e+00> : vector<16x256xf32>
    %43 = tpu.matmul %3, %42, %cst_23 {dimension_numbers = #tpu.dot_dimension_numbers<[1], [0], [0], [1], [0, 0, 1, 1], [], []>} : vector<16x32xf32>, vector<32x256xf32>, vector<16x256xf32> -> vector<16x256xf32>
    %44 = arith.addf %43, %12 : vector<16x256xf32>
    %45 = vector.extract_strided_slice %44 {offsets = [0, 0], sizes = [8, 256], strides = [1, 1]} : vector<16x256xf32> to vector<8x256xf32>
    %46 = vector.extract_strided_slice %44 {offsets = [8, 0], sizes = [8, 256], strides = [1, 1]} : vector<16x256xf32> to vector<8x256xf32>
    %cst_24 = arith.constant -5.000000e+00 : f32
    %cst_25 = arith.constant 3.000000e+00 : f32
    %47 = vector.broadcast %cst_24 : f32 to vector<8x256xf32>
    %48 = arith.maximumf %47, %46 : vector<8x256xf32>
    %49 = vector.broadcast %cst_25 : f32 to vector<8x256xf32>
    %50 = arith.minimumf %49, %48 : vector<8x256xf32>
    %51 = math.exp %50 : vector<8x256xf32>
    %52 = arith.mulf %0, %51 : vector<8x256xf32>
    %53 = arith.addf %52, %45 : vector<8x256xf32>
    %c1_i32 = arith.constant 1 : i32
    %54 = vector.broadcast %c1_i32 : i32 to vector<8x256xi32>
    %55 = arith.cmpi eq, %13, %54 : vector<8x256xi32>
    %56 = arith.select %55, %53, %34 : vector<8x256xi1>, vector<8x256xf32>
    %cst_26 = arith.constant dense<0.000000e+00> : vector<32x256xf32>
    %57 = tpu.matmul %1, %56, %cst_26 {dimension_numbers = #tpu.dot_dimension_numbers<[1], [0], [0], [1], [0, 0, 1, 1], [], []>} : vector<32x8xf32>, vector<8x256xf32>, vector<32x256xf32> -> vector<32x256xf32>
    %58 = arith.addf %57, %6 : vector<32x256xf32>
    %cst_27 = arith.constant 0.000000e+00 : f32
    %59 = vector.broadcast %cst_27 : f32 to vector<32x256xf32>
    %60 = arith.maximumf %58, %59 : vector<32x256xf32>
    %cst_28 = arith.constant dense<0.000000e+00> : vector<32x256xf32>
    %61 = tpu.matmul %2, %60, %cst_28 {dimension_numbers = #tpu.dot_dimension_numbers<[1], [0], [0], [1], [0, 0, 1, 1], [], []>} : vector<32x32xf32>, vector<32x256xf32>, vector<32x256xf32> -> vector<32x256xf32>
    %62 = arith.addf %61, %9 : vector<32x256xf32>
    %cst_29 = arith.constant 0.000000e+00 : f32
    %63 = vector.broadcast %cst_29 : f32 to vector<32x256xf32>
    %64 = arith.maximumf %62, %63 : vector<32x256xf32>
    %cst_30 = arith.constant dense<0.000000e+00> : vector<16x256xf32>
    %65 = tpu.matmul %3, %64, %cst_30 {dimension_numbers = #tpu.dot_dimension_numbers<[1], [0], [0], [1], [0, 0, 1, 1], [], []>} : vector<16x32xf32>, vector<32x256xf32>, vector<16x256xf32> -> vector<16x256xf32>
    %66 = arith.addf %65, %12 : vector<16x256xf32>
    %67 = vector.extract_strided_slice %66 {offsets = [0, 0], sizes = [8, 256], strides = [1, 1]} : vector<16x256xf32> to vector<8x256xf32>
    %68 = vector.extract_strided_slice %66 {offsets = [8, 0], sizes = [8, 256], strides = [1, 1]} : vector<16x256xf32> to vector<8x256xf32>
    %cst_31 = arith.constant -5.000000e+00 : f32
    %cst_32 = arith.constant 3.000000e+00 : f32
    %69 = vector.broadcast %cst_31 : f32 to vector<8x256xf32>
    %70 = arith.maximumf %69, %68 : vector<8x256xf32>
    %71 = vector.broadcast %cst_32 : f32 to vector<8x256xf32>
    %72 = arith.minimumf %71, %70 : vector<8x256xf32>
    %73 = math.exp %72 : vector<8x256xf32>
    %74 = arith.mulf %0, %73 : vector<8x256xf32>
    %75 = arith.addf %74, %67 : vector<8x256xf32>
    %c2_i32 = arith.constant 2 : i32
    %76 = vector.broadcast %c2_i32 : i32 to vector<8x256xi32>
    %77 = arith.cmpi eq, %13, %76 : vector<8x256xi32>
    %78 = arith.select %77, %75, %56 : vector<8x256xi1>, vector<8x256xf32>
    %cst_33 = arith.constant dense<0.000000e+00> : vector<32x256xf32>
    %79 = tpu.matmul %1, %78, %cst_33 {dimension_numbers = #tpu.dot_dimension_numbers<[1], [0], [0], [1], [0, 0, 1, 1], [], []>} : vector<32x8xf32>, vector<8x256xf32>, vector<32x256xf32> -> vector<32x256xf32>
    %80 = arith.addf %79, %6 : vector<32x256xf32>
    %cst_34 = arith.constant 0.000000e+00 : f32
    %81 = vector.broadcast %cst_34 : f32 to vector<32x256xf32>
    %82 = arith.maximumf %80, %81 : vector<32x256xf32>
    %cst_35 = arith.constant dense<0.000000e+00> : vector<32x256xf32>
    %83 = tpu.matmul %2, %82, %cst_35 {dimension_numbers = #tpu.dot_dimension_numbers<[1], [0], [0], [1], [0, 0, 1, 1], [], []>} : vector<32x32xf32>, vector<32x256xf32>, vector<32x256xf32> -> vector<32x256xf32>
    %84 = arith.addf %83, %9 : vector<32x256xf32>
    %cst_36 = arith.constant 0.000000e+00 : f32
    %85 = vector.broadcast %cst_36 : f32 to vector<32x256xf32>
    %86 = arith.maximumf %84, %85 : vector<32x256xf32>
    %cst_37 = arith.constant dense<0.000000e+00> : vector<16x256xf32>
    %87 = tpu.matmul %3, %86, %cst_37 {dimension_numbers = #tpu.dot_dimension_numbers<[1], [0], [0], [1], [0, 0, 1, 1], [], []>} : vector<16x32xf32>, vector<32x256xf32>, vector<16x256xf32> -> vector<16x256xf32>
    %88 = arith.addf %87, %12 : vector<16x256xf32>
    %89 = vector.extract_strided_slice %88 {offsets = [0, 0], sizes = [8, 256], strides = [1, 1]} : vector<16x256xf32> to vector<8x256xf32>
    %90 = vector.extract_strided_slice %88 {offsets = [8, 0], sizes = [8, 256], strides = [1, 1]} : vector<16x256xf32> to vector<8x256xf32>
    %cst_38 = arith.constant -5.000000e+00 : f32
    %cst_39 = arith.constant 3.000000e+00 : f32
    %91 = vector.broadcast %cst_38 : f32 to vector<8x256xf32>
    %92 = arith.maximumf %91, %90 : vector<8x256xf32>
    %93 = vector.broadcast %cst_39 : f32 to vector<8x256xf32>
    %94 = arith.minimumf %93, %92 : vector<8x256xf32>
    %95 = math.exp %94 : vector<8x256xf32>
    %96 = arith.mulf %0, %95 : vector<8x256xf32>
    %97 = arith.addf %96, %89 : vector<8x256xf32>
    %c3_i32 = arith.constant 3 : i32
    %98 = vector.broadcast %c3_i32 : i32 to vector<8x256xi32>
    %99 = arith.cmpi eq, %13, %98 : vector<8x256xi32>
    %100 = arith.select %99, %97, %78 : vector<8x256xi1>, vector<8x256xf32>
    %cst_40 = arith.constant dense<0.000000e+00> : vector<32x256xf32>
    %101 = tpu.matmul %1, %100, %cst_40 {dimension_numbers = #tpu.dot_dimension_numbers<[1], [0], [0], [1], [0, 0, 1, 1], [], []>} : vector<32x8xf32>, vector<8x256xf32>, vector<32x256xf32> -> vector<32x256xf32>
    %102 = arith.addf %101, %6 : vector<32x256xf32>
    %cst_41 = arith.constant 0.000000e+00 : f32
    %103 = vector.broadcast %cst_41 : f32 to vector<32x256xf32>
    %104 = arith.maximumf %102, %103 : vector<32x256xf32>
    %cst_42 = arith.constant dense<0.000000e+00> : vector<32x256xf32>
    %105 = tpu.matmul %2, %104, %cst_42 {dimension_numbers = #tpu.dot_dimension_numbers<[1], [0], [0], [1], [0, 0, 1, 1], [], []>} : vector<32x32xf32>, vector<32x256xf32>, vector<32x256xf32> -> vector<32x256xf32>
    %106 = arith.addf %105, %9 : vector<32x256xf32>
    %cst_43 = arith.constant 0.000000e+00 : f32
    %107 = vector.broadcast %cst_43 : f32 to vector<32x256xf32>
    %108 = arith.maximumf %106, %107 : vector<32x256xf32>
    %cst_44 = arith.constant dense<0.000000e+00> : vector<16x256xf32>
    %109 = tpu.matmul %3, %108, %cst_44 {dimension_numbers = #tpu.dot_dimension_numbers<[1], [0], [0], [1], [0, 0, 1, 1], [], []>} : vector<16x32xf32>, vector<32x256xf32>, vector<16x256xf32> -> vector<16x256xf32>
    %110 = arith.addf %109, %12 : vector<16x256xf32>
    %111 = vector.extract_strided_slice %110 {offsets = [0, 0], sizes = [8, 256], strides = [1, 1]} : vector<16x256xf32> to vector<8x256xf32>
    %112 = vector.extract_strided_slice %110 {offsets = [8, 0], sizes = [8, 256], strides = [1, 1]} : vector<16x256xf32> to vector<8x256xf32>
    %cst_45 = arith.constant -5.000000e+00 : f32
    %cst_46 = arith.constant 3.000000e+00 : f32
    %113 = vector.broadcast %cst_45 : f32 to vector<8x256xf32>
    %114 = arith.maximumf %113, %112 : vector<8x256xf32>
    %115 = vector.broadcast %cst_46 : f32 to vector<8x256xf32>
    %116 = arith.minimumf %115, %114 : vector<8x256xf32>
    %117 = math.exp %116 : vector<8x256xf32>
    %118 = arith.mulf %0, %117 : vector<8x256xf32>
    %119 = arith.addf %118, %111 : vector<8x256xf32>
    %c4_i32 = arith.constant 4 : i32
    %120 = vector.broadcast %c4_i32 : i32 to vector<8x256xi32>
    %121 = arith.cmpi eq, %13, %120 : vector<8x256xi32>
    %122 = arith.select %121, %119, %100 : vector<8x256xi1>, vector<8x256xf32>
    %cst_47 = arith.constant dense<0.000000e+00> : vector<32x256xf32>
    %123 = tpu.matmul %1, %122, %cst_47 {dimension_numbers = #tpu.dot_dimension_numbers<[1], [0], [0], [1], [0, 0, 1, 1], [], []>} : vector<32x8xf32>, vector<8x256xf32>, vector<32x256xf32> -> vector<32x256xf32>
    %124 = arith.addf %123, %6 : vector<32x256xf32>
    %cst_48 = arith.constant 0.000000e+00 : f32
    %125 = vector.broadcast %cst_48 : f32 to vector<32x256xf32>
    %126 = arith.maximumf %124, %125 : vector<32x256xf32>
    %cst_49 = arith.constant dense<0.000000e+00> : vector<32x256xf32>
    %127 = tpu.matmul %2, %126, %cst_49 {dimension_numbers = #tpu.dot_dimension_numbers<[1], [0], [0], [1], [0, 0, 1, 1], [], []>} : vector<32x32xf32>, vector<32x256xf32>, vector<32x256xf32> -> vector<32x256xf32>
    %128 = arith.addf %127, %9 : vector<32x256xf32>
    %cst_50 = arith.constant 0.000000e+00 : f32
    %129 = vector.broadcast %cst_50 : f32 to vector<32x256xf32>
    %130 = arith.maximumf %128, %129 : vector<32x256xf32>
    %cst_51 = arith.constant dense<0.000000e+00> : vector<16x256xf32>
    %131 = tpu.matmul %3, %130, %cst_51 {dimension_numbers = #tpu.dot_dimension_numbers<[1], [0], [0], [1], [0, 0, 1, 1], [], []>} : vector<16x32xf32>, vector<32x256xf32>, vector<16x256xf32> -> vector<16x256xf32>
    %132 = arith.addf %131, %12 : vector<16x256xf32>
    %133 = vector.extract_strided_slice %132 {offsets = [0, 0], sizes = [8, 256], strides = [1, 1]} : vector<16x256xf32> to vector<8x256xf32>
    %134 = vector.extract_strided_slice %132 {offsets = [8, 0], sizes = [8, 256], strides = [1, 1]} : vector<16x256xf32> to vector<8x256xf32>
    %cst_52 = arith.constant -5.000000e+00 : f32
    %cst_53 = arith.constant 3.000000e+00 : f32
    %135 = vector.broadcast %cst_52 : f32 to vector<8x256xf32>
    %136 = arith.maximumf %135, %134 : vector<8x256xf32>
    %137 = vector.broadcast %cst_53 : f32 to vector<8x256xf32>
    %138 = arith.minimumf %137, %136 : vector<8x256xf32>
    %139 = math.exp %138 : vector<8x256xf32>
    %140 = arith.mulf %0, %139 : vector<8x256xf32>
    %141 = arith.addf %140, %133 : vector<8x256xf32>
    %c5_i32 = arith.constant 5 : i32
    %142 = vector.broadcast %c5_i32 : i32 to vector<8x256xi32>
    %143 = arith.cmpi eq, %13, %142 : vector<8x256xi32>
    %144 = arith.select %143, %141, %122 : vector<8x256xi1>, vector<8x256xf32>
    %cst_54 = arith.constant dense<0.000000e+00> : vector<32x256xf32>
    %145 = tpu.matmul %1, %144, %cst_54 {dimension_numbers = #tpu.dot_dimension_numbers<[1], [0], [0], [1], [0, 0, 1, 1], [], []>} : vector<32x8xf32>, vector<8x256xf32>, vector<32x256xf32> -> vector<32x256xf32>
    %146 = arith.addf %145, %6 : vector<32x256xf32>
    %cst_55 = arith.constant 0.000000e+00 : f32
    %147 = vector.broadcast %cst_55 : f32 to vector<32x256xf32>
    %148 = arith.maximumf %146, %147 : vector<32x256xf32>
    %cst_56 = arith.constant dense<0.000000e+00> : vector<32x256xf32>
    %149 = tpu.matmul %2, %148, %cst_56 {dimension_numbers = #tpu.dot_dimension_numbers<[1], [0], [0], [1], [0, 0, 1, 1], [], []>} : vector<32x32xf32>, vector<32x256xf32>, vector<32x256xf32> -> vector<32x256xf32>
    %150 = arith.addf %149, %9 : vector<32x256xf32>
    %cst_57 = arith.constant 0.000000e+00 : f32
    %151 = vector.broadcast %cst_57 : f32 to vector<32x256xf32>
    %152 = arith.maximumf %150, %151 : vector<32x256xf32>
    %cst_58 = arith.constant dense<0.000000e+00> : vector<16x256xf32>
    %153 = tpu.matmul %3, %152, %cst_58 {dimension_numbers = #tpu.dot_dimension_numbers<[1], [0], [0], [1], [0, 0, 1, 1], [], []>} : vector<16x32xf32>, vector<32x256xf32>, vector<16x256xf32> -> vector<16x256xf32>
    %154 = arith.addf %153, %12 : vector<16x256xf32>
    %155 = vector.extract_strided_slice %154 {offsets = [0, 0], sizes = [8, 256], strides = [1, 1]} : vector<16x256xf32> to vector<8x256xf32>
    %156 = vector.extract_strided_slice %154 {offsets = [8, 0], sizes = [8, 256], strides = [1, 1]} : vector<16x256xf32> to vector<8x256xf32>
    %cst_59 = arith.constant -5.000000e+00 : f32
    %cst_60 = arith.constant 3.000000e+00 : f32
    %157 = vector.broadcast %cst_59 : f32 to vector<8x256xf32>
    %158 = arith.maximumf %157, %156 : vector<8x256xf32>
    %159 = vector.broadcast %cst_60 : f32 to vector<8x256xf32>
    %160 = arith.minimumf %159, %158 : vector<8x256xf32>
    %161 = math.exp %160 : vector<8x256xf32>
    %162 = arith.mulf %0, %161 : vector<8x256xf32>
    %163 = arith.addf %162, %155 : vector<8x256xf32>
    %c6_i32 = arith.constant 6 : i32
    %164 = vector.broadcast %c6_i32 : i32 to vector<8x256xi32>
    %165 = arith.cmpi eq, %13, %164 : vector<8x256xi32>
    %166 = arith.select %165, %163, %144 : vector<8x256xi1>, vector<8x256xf32>
    %cst_61 = arith.constant dense<0.000000e+00> : vector<32x256xf32>
    %167 = tpu.matmul %1, %166, %cst_61 {dimension_numbers = #tpu.dot_dimension_numbers<[1], [0], [0], [1], [0, 0, 1, 1], [], []>} : vector<32x8xf32>, vector<8x256xf32>, vector<32x256xf32> -> vector<32x256xf32>
    %168 = arith.addf %167, %6 : vector<32x256xf32>
    %cst_62 = arith.constant 0.000000e+00 : f32
    %169 = vector.broadcast %cst_62 : f32 to vector<32x256xf32>
    %170 = arith.maximumf %168, %169 : vector<32x256xf32>
    %cst_63 = arith.constant dense<0.000000e+00> : vector<32x256xf32>
    %171 = tpu.matmul %2, %170, %cst_63 {dimension_numbers = #tpu.dot_dimension_numbers<[1], [0], [0], [1], [0, 0, 1, 1], [], []>} : vector<32x32xf32>, vector<32x256xf32>, vector<32x256xf32> -> vector<32x256xf32>
    %172 = arith.addf %171, %9 : vector<32x256xf32>
    %cst_64 = arith.constant 0.000000e+00 : f32
    %173 = vector.broadcast %cst_64 : f32 to vector<32x256xf32>
    %174 = arith.maximumf %172, %173 : vector<32x256xf32>
    %cst_65 = arith.constant dense<0.000000e+00> : vector<16x256xf32>
    %175 = tpu.matmul %3, %174, %cst_65 {dimension_numbers = #tpu.dot_dimension_numbers<[1], [0], [0], [1], [0, 0, 1, 1], [], []>} : vector<16x32xf32>, vector<32x256xf32>, vector<16x256xf32> -> vector<16x256xf32>
    %176 = arith.addf %175, %12 : vector<16x256xf32>
    %177 = vector.extract_strided_slice %176 {offsets = [0, 0], sizes = [8, 256], strides = [1, 1]} : vector<16x256xf32> to vector<8x256xf32>
    %178 = vector.extract_strided_slice %176 {offsets = [8, 0], sizes = [8, 256], strides = [1, 1]} : vector<16x256xf32> to vector<8x256xf32>
    %cst_66 = arith.constant -5.000000e+00 : f32
    %cst_67 = arith.constant 3.000000e+00 : f32
    %179 = vector.broadcast %cst_66 : f32 to vector<8x256xf32>
    %180 = arith.maximumf %179, %178 : vector<8x256xf32>
    %181 = vector.broadcast %cst_67 : f32 to vector<8x256xf32>
    %182 = arith.minimumf %181, %180 : vector<8x256xf32>
    %183 = math.exp %182 : vector<8x256xf32>
    %184 = arith.mulf %0, %183 : vector<8x256xf32>
    %185 = arith.addf %184, %177 : vector<8x256xf32>
    %c7_i32 = arith.constant 7 : i32
    %186 = vector.broadcast %c7_i32 : i32 to vector<8x256xi32>
    %187 = arith.cmpi eq, %13, %186 : vector<8x256xi32>
    %188 = arith.select %187, %185, %166 : vector<8x256xi1>, vector<8x256xf32>
    %c0_68 = arith.constant 0 : index
    %c0_69 = arith.constant 0 : index
    %189 = vector.load %arg8[%c0_68, %c0_69] : memref<8x256xf32, #tpu.memory_space<vmem>>, vector<8x256xf32>
    tpu.vector_store %arg8[%c0_68, %c0_69], %188 {strides = array<i32>} : memref<8x256xf32, #tpu.memory_space<vmem>>, vector<8x256xf32>,
    return
  }
  func.func @transform_0(%arg0: i32) -> (i32, i32) {
    %c0_i32 = arith.constant 0 : i32
    %c0_i32_0 = arith.constant 0 : i32
    return %c0_i32, %arg0 : i32, i32
  }
  func.func @transform_1(%arg0: i32) -> (i32, i32) {
    %c0_i32 = arith.constant 0 : i32
    %c0_i32_0 = arith.constant 0 : i32
    %c0_i32_1 = arith.constant 0 : i32
    return %c0_i32, %c0_i32_0 : i32, i32
  }
  func.func @transform_2(%arg0: i32) -> (i32, i32) {
    %c0_i32 = arith.constant 0 : i32
    %c0_i32_0 = arith.constant 0 : i32
    %c0_i32_1 = arith.constant 0 : i32
    return %c0_i32, %c0_i32_0 : i32, i32
  }
  func.func @transform_3(%arg0: i32) -> (i32, i32) {
    %c0_i32 = arith.constant 0 : i32
    %c0_i32_0 = arith.constant 0 : i32
    %c0_i32_1 = arith.constant 0 : i32
    return %c0_i32, %c0_i32_0 : i32, i32
  }
  func.func @transform_4(%arg0: i32) -> (i32, i32) {
    %c0_i32 = arith.constant 0 : i32
    %c0_i32_0 = arith.constant 0 : i32
    %c0_i32_1 = arith.constant 0 : i32
    return %c0_i32, %c0_i32_0 : i32, i32
  }
  func.func @transform_5(%arg0: i32) -> (i32, i32) {
    %c0_i32 = arith.constant 0 : i32
    %c0_i32_0 = arith.constant 0 : i32
    %c0_i32_1 = arith.constant 0 : i32
    return %c0_i32, %c0_i32_0 : i32, i32
  }
  func.func @transform_6(%arg0: i32) -> (i32, i32) {
    %c0_i32 = arith.constant 0 : i32
    %c0_i32_0 = arith.constant 0 : i32
    %c0_i32_1 = arith.constant 0 : i32
    return %c0_i32, %c0_i32_0 : i32, i32
  }
  func.func @transform_7(%arg0: i32) -> (i32, i32) {
    %c0_i32 = arith.constant 0 : i32
    %c0_i32_0 = arith.constant 0 : i32
    return %c0_i32, %arg0 : i32, i32
  }
}

</mosaic_0001>

<llo_original>
// kernel: tpu_custom_call.1
$region0: #{tpu_custom_call.1}
  #allocation0 [shape = 'u32[]', space=smem, size = 0x4, offset = 0x4, fixed_abs, tag = 'smem constant byte address 0x4 - core index']
  #allocation1 [shape = 'u32[144,128]{1,0:T(1,128)}', space=vmem, size = 0x12000, scoped, tag = 'internal scratch']
  %s0 = inlined_call_operand.vmem [shape: f32[8,512], index: 0, kind: input, shape index: {}]
  %s1 = inlined_call_operand.vmem [shape: f32[32,8], index: 1, kind: input, shape index: {}]
  %s2 = inlined_call_operand.vmem [shape: f32[32,1], index: 2, kind: input, shape index: {}]
  %s3 = inlined_call_operand.vmem [shape: f32[32,32], index: 3, kind: input, shape index: {}]
  %s4 = inlined_call_operand.vmem [shape: f32[32,1], index: 4, kind: input, shape index: {}]
  %s5 = inlined_call_operand.vmem [shape: f32[16,32], index: 5, kind: input, shape index: {}]
  %s6 = inlined_call_operand.vmem [shape: f32[16,1], index: 6, kind: input, shape index: {}]
  %s7 = inlined_call_operand.hbm [shape: f32[8,512], index: 7, kind: output, shape index: {}]
  %s8 = sld [smem:[#allocation0]]
  $region61: #{tpu_custom_call.1} parent=0
    _
  %s10 = ssub.s32 1, %s8
  %s11 = scalar_select 0, %s10, %s8
  $region1: #{tpu_custom_call.1} parent=0
    #allocation2 [shape = 'u8[16384]{0}', space=vmem, size = 0x4000, scoped, tag = 'output window, operand 0']
    #allocation3 [shape = 's32[2]{0}', space=sflag, size = 0x8, scoped, tag = 'scoped memory for tpu_custom_call.1']
    %12 = vsyncpa [#allocation3], 0
    %s13 = scalar_lea.sflag [#allocation3], 1
    %14 = vsyncpa %s13, 0
    loop: start=0, step=1, limit=4
    $region2: #{tpu_custom_call.1} parent=1 // loop_pre_header
      _
    $region3: #{tpu_custom_call.1} parent=1 // loop_header
      %s16 = sphi 0, %s20
      %p17 = scmp.ge.s32.totalorder %s16, 4
      %s26 = sphi 0, %s28
      %s29 = sphi 0, %s26
      %s30 = sphi 0, %s29
      %s46 = sphi 0, %s30
      %s50 = sphi 0, %s50
      %s52 = sphi 0, %s50
      %s53 = sphi 0, %s52
      %s67 = sphi 0, %s53
      %s71 = sphi 0, %s71
      %s73 = sphi 0, %s71
      %s74 = sphi 0, %s73
      %s88 = sphi 0, %s74
      %s92 = sphi 0, %s92
      %s94 = sphi 0, %s92
      %s95 = sphi 0, %s94
      %s109 = sphi 0, %s95
      %s113 = sphi 0, %s113
      %s115 = sphi 0, %s113
      %s116 = sphi 0, %s115
      %s130 = sphi 0, %s116
      %s134 = sphi 0, %s134
      %s136 = sphi 0, %s134
      %s137 = sphi 0, %s136
      %s151 = sphi 0, %s137
      %s155 = sphi 0, %s155
      %s157 = sphi 0, %s155
      %s158 = sphi 0, %s157
      %s172 = sphi 0, %s158
      %s178 = sphi 0, %s180
      %s181 = sphi 0, %s178
      %s182 = sphi 0, %s181
      %s198 = sphi 0, %s182
    $region4: #{tpu_custom_call.1} parent=1 // loop_header_branch
      %19 = sbr.rel (%p17) target = $region8
    $region5: #{tpu_custom_call.1} parent=1 // loop_body
      %s21 = ssub.s32 %s16, 1
      %s22 = ssub.s32 %s16, 2
      %s23 = sadd.s32 %s16, 1
      %s24 = ssub.s32 %s16, %s23
      %p25 = scmp.eq.s32.totalorder %s24, 0
      %s27 = sadd.s32 %s26, 1
      %s28 = scalar_select %p25, %s26, %s27
      %p31 = pneg %p25
      %p32 = scmp.eq.s32.totalorder %s16, 1
      %p33 = por %p31, %p32
      %p34 = scmp.ne.s32.totalorder %s26, %s29
      %p35 = scmp.eq.s32.totalorder %s16, 0
      %p36 = por %p34, %p35
      %p37 = scmp.ne.s32.totalorder %s26, %s29
      %p38 = scmp.eq.s32.totalorder %s21, 1
      %p39 = por %p37, %p38
      %p40 = scmp.ne.s32.totalorder %s29, %s30
      %p41 = scmp.eq.s32.totalorder %s21, 0
      %p42 = por %p40, %p41
      %p43 = scmp.ne.s32.totalorder %s29, %s30
      %p44 = scmp.eq.s32.totalorder %s22, 1
      %p45 = por %p43, %p44
      %p47 = scmp.ne.s32.totalorder %s30, %s46
      %p48 = scmp.eq.s32.totalorder %s22, 0
      %p49 = por %p47, %p48
      %s51 = sadd.s32 %s50, 1
      %p54 = scmp.eq.s32.totalorder %s16, 1
      %p55 = scmp.ne.s32.totalorder %s50, %s52
      %p56 = scmp.eq.s32.totalorder %s16, 0
      %p57 = por %p55, %p56
      %p58 = scmp.ne.s32.totalorder %s50, %s52
      %p59 = scmp.eq.s32.totalorder %s21, 1
      %p60 = por %p58, %p59
      %p61 = scmp.ne.s32.totalorder %s52, %s53
      %p62 = scmp.eq.s32.totalorder %s21, 0
      %p63 = por %p61, %p62
      %p64 = scmp.ne.s32.totalorder %s52, %s53
      %p65 = scmp.eq.s32.totalorder %s22, 1
      %p66 = por %p64, %p65
      %p68 = scmp.ne.s32.totalorder %s53, %s67
      %p69 = scmp.eq.s32.totalorder %s22, 0
      %p70 = por %p68, %p69
      %s72 = sadd.s32 %s71, 1
      %p75 = scmp.eq.s32.totalorder %s16, 1
      %p76 = scmp.ne.s32.totalorder %s71, %s73
      %p77 = scmp.eq.s32.totalorder %s16, 0
      %p78 = por %p76, %p77
      %p79 = scmp.ne.s32.totalorder %s71, %s73
      %p80 = scmp.eq.s32.totalorder %s21, 1
      %p81 = por %p79, %p80
      %p82 = scmp.ne.s32.totalorder %s73, %s74
      %p83 = scmp.eq.s32.totalorder %s21, 0
      %p84 = por %p82, %p83
      %p85 = scmp.ne.s32.totalorder %s73, %s74
      %p86 = scmp.eq.s32.totalorder %s22, 1
      %p87 = por %p85, %p86
      %p89 = scmp.ne.s32.totalorder %s74, %s88
      %p90 = scmp.eq.s32.totalorder %s22, 0
      %p91 = por %p89, %p90
      %s93 = sadd.s32 %s92, 1
      %p96 = scmp.eq.s32.totalorder %s16, 1
      %p97 = scmp.ne.s32.totalorder %s92, %s94
      %p98 = scmp.eq.s32.totalorder %s16, 0
      %p99 = por %p97, %p98
      %p100 = scmp.ne.s32.totalorder %s92, %s94
      %p101 = scmp.eq.s32.totalorder %s21, 1
      %p102 = por %p100, %p101
      %p103 = scmp.ne.s32.totalorder %s94, %s95
      %p104 = scmp.eq.s32.totalorder %s21, 0
      %p105 = por %p103, %p104
      %p106 = scmp.ne.s32.totalorder %s94, %s95
      %p107 = scmp.eq.s32.totalorder %s22, 1
      %p108 = por %p106, %p107
      %p110 = scmp.ne.s32.totalorder %s95, %s109
      %p111 = scmp.eq.s32.totalorder %s22, 0
      %p112 = por %p110, %p111
      %s114 = sadd.s32 %s113, 1
      %p117 = scmp.eq.s32.totalorder %s16, 1
      %p118 = scmp.ne.s32.totalorder %s113, %s115
      %p119 = scmp.eq.s32.totalorder %s16, 0
      %p120 = por %p118, %p119
      %p121 = scmp.ne.s32.totalorder %s113, %s115
      %p122 = scmp.eq.s32.totalorder %s21, 1
      %p123 = por %p121, %p122
      %p124 = scmp.ne.s32.totalorder %s115, %s116
      %p125 = scmp.eq.s32.totalorder %s21, 0
      %p126 = por %p124, %p125
      %p127 = scmp.ne.s32.totalorder %s115, %s116
      %p128 = scmp.eq.s32.totalorder %s22, 1
      %p129 = por %p127, %p128
      %p131 = scmp.ne.s32.totalorder %s116, %s130
      %p132 = scmp.eq.s32.totalorder %s22, 0
      %p133 = por %p131, %p132
      %s135 = sadd.s32 %s134, 1
      %p138 = scmp.eq.s32.totalorder %s16, 1
      %p139 = scmp.ne.s32.totalorder %s134, %s136
      %p140 = scmp.eq.s32.totalorder %s16, 0
      %p141 = por %p139, %p140
      %p142 = scmp.ne.s32.totalorder %s134, %s136
      %p143 = scmp.eq.s32.totalorder %s21, 1
      %p144 = por %p142, %p143
      %p145 = scmp.ne.s32.totalorder %s136, %s137
      %p146 = scmp.eq.s32.totalorder %s21, 0
      %p147 = por %p145, %p146
      %p148 = scmp.ne.s32.totalorder %s136, %s137
      %p149 = scmp.eq.s32.totalorder %s22, 1
      %p150 = por %p148, %p149
      %p152 = scmp.ne.s32.totalorder %s137, %s151
      %p153 = scmp.eq.s32.totalorder %s22, 0
      %p154 = por %p152, %p153
      %s156 = sadd.s32 %s155, 1
      %p159 = scmp.eq.s32.totalorder %s16, 1
      %p160 = scmp.ne.s32.totalorder %s155, %s157
      %p161 = scmp.eq.s32.totalorder %s16, 0
      %p162 = por %p160, %p161
      %p163 = scmp.ne.s32.totalorder %s155, %s157
      %p164 = scmp.eq.s32.totalorder %s21, 1
      %p165 = por %p163, %p164
      %p166 = scmp.ne.s32.totalorder %s157, %s158
      %p167 = scmp.eq.s32.totalorder %s21, 0
      %p168 = por %p166, %p167
      %p169 = scmp.ne.s32.totalorder %s157, %s158
      %p170 = scmp.eq.s32.totalorder %s22, 1
      %p171 = por %p169, %p170
      %p173 = scmp.ne.s32.totalorder %s158, %s172
      %p174 = scmp.eq.s32.totalorder %s22, 0
      %p175 = por %p173, %p174
      %s176 = ssub.s32 %s16, %s23
      %p177 = scmp.eq.s32.totalorder %s176, 0
      %s179 = sadd.s32 %s178, 1
      %s180 = scalar_select %p177, %s178, %s179
      %p183 = pneg %p177
      %p184 = scmp.eq.s32.totalorder %s16, 1
      %p185 = por %p183, %p184
      %p186 = scmp.ne.s32.totalorder %s178, %s181
      %p187 = scmp.eq.s32.totalorder %s16, 0
      %p188 = por %p186, %p187
      %p189 = scmp.ne.s32.totalorder %s178, %s181
      %p190 = scmp.eq.s32.totalorder %s21, 1
      %p191 = por %p189, %p190
      %p192 = scmp.ne.s32.totalorder %s181, %s182
      %p193 = scmp.eq.s32.totalorder %s21, 0
      %p194 = por %p192, %p193
      %p195 = scmp.ne.s32.totalorder %s181, %s182
      %p196 = scmp.eq.s32.totalorder %s22, 1
      %p197 = por %p195, %p196
      %p199 = scmp.ne.s32.totalorder %s182, %s198
      %p200 = scmp.eq.s32.totalorder %s22, 0
      %p201 = por %p199, %p200
      %p202 = scmp.le.s32.totalorder 1, %s16
      %p203 = scmp.lt.s32.totalorder %s16, 3
      %p204 = pnand %p202, %p203
      %p205 = pneg %p204
      // Predicated region
      $region9: #{tpu_custom_call.1} parent=5 // pred_check
        _
      $region10: #{tpu_custom_call.1} parent=5 // pred_check_branch
        %207 = sbr.rel (%p204) target = $region12
      $region11: #{tpu_custom_call.1} parent=5 // pred_region
        %s208 = ssub.s32 %s16, 1
        // Predicated region
        $region13: #{tpu_custom_call.1} parent=11 // pred_check
          %p209 = pneg %p63
        $region14: #{tpu_custom_call.1} parent=11 // pred_check_branch
          %211 = sbr.rel (%p209) target = $region16
        $region15: #{tpu_custom_call.1} parent=11 // pred_region
          _
        $region16: #{tpu_custom_call.1} parent=11 // pred_fallthru
          _
        // Predicated region
        $region17: #{tpu_custom_call.1} parent=11 // pred_check
          %p212 = pneg %p84
        $region18: #{tpu_custom_call.1} parent=11 // pred_check_branch
          %214 = sbr.rel (%p212) target = $region20
        $region19: #{tpu_custom_call.1} parent=11 // pred_region
          _
        $region20: #{tpu_custom_call.1} parent=11 // pred_fallthru
          _
        // Predicated region
        $region21: #{tpu_custom_call.1} parent=11 // pred_check
          %p215 = pneg %p105
        $region22: #{tpu_custom_call.1} parent=11 // pred_check_branch
          %217 = sbr.rel (%p215) target = $region24
        $region23: #{tpu_custom_call.1} parent=11 // pred_region
          _
        $region24: #{tpu_custom_call.1} parent=11 // pred_fallthru
          _
        // Predicated region
        $region25: #{tpu_custom_call.1} parent=11 // pred_check
          %p218 = pneg %p126
        $region26: #{tpu_custom_call.1} parent=11 // pred_check_branch
          %220 = sbr.rel (%p218) target = $region28
        $region27: #{tpu_custom_call.1} parent=11 // pred_region
          _
        $region28: #{tpu_custom_call.1} parent=11 // pred_fallthru
          _
        // Predicated region
        $region29: #{tpu_custom_call.1} parent=11 // pred_check
          %p221 = pneg %p147
        $region30: #{tpu_custom_call.1} parent=11 // pred_check_branch
          %223 = sbr.rel (%p221) target = $region32
        $region31: #{tpu_custom_call.1} parent=11 // pred_region
          _
        $region32: #{tpu_custom_call.1} parent=11 // pred_fallthru
          _
        // Predicated region
        $region33: #{tpu_custom_call.1} parent=11 // pred_check
          %p224 = pneg %p168
        $region34: #{tpu_custom_call.1} parent=11 // pred_check_branch
          %226 = sbr.rel (%p224) target = $region36
        $region35: #{tpu_custom_call.1} parent=11 // pred_region
          _
        $region36: #{tpu_custom_call.1} parent=11 // pred_fallthru
          _
      $region12: #{tpu_custom_call.1} parent=5 // pred_fallthru
        _
      %p227 = scmp.lt.s32.totalorder %s16, 2
      // Predicated region
      $region37: #{tpu_custom_call.1} parent=5 // pred_check
        %p228 = pneg %p227
      $region38: #{tpu_custom_call.1} parent=5 // pred_check_branch
        %230 = sbr.rel (%p228) target = $region40
      $region39: #{tpu_custom_call.1} parent=5 // pred_region
        // Predicated region
        $region41: #{tpu_custom_call.1} parent=39 // pred_check
          %p231 = pneg %p36
        $region42: #{tpu_custom_call.1} parent=39 // pred_check_branch
          %233 = sbr.rel (%p231) target = $region44
        $region43: #{tpu_custom_call.1} parent=39 // pred_region
          %s234 = smul.u32 2, %s16
          %p235 = scmp.lt.s32.totalorder %s234, 3
          %s236 = scalar_select %p235, %s234, 3
          %s237 = smul.addr %s236, 8
          %s238 = scalar_lea.vmem %s0, %s237
          %s239 = smul.u32 2, %s16
        $region44: #{tpu_custom_call.1} parent=39 // pred_fallthru
          _
      $region40: #{tpu_custom_call.1} parent=5 // pred_fallthru
        _
      %p240 = scmp.le.s32.totalorder 1, %s16
      %p241 = scmp.lt.s32.totalorder %s16, 3
      %p242 = pnand %p240, %p241
      %p243 = pneg %p242
      // Predicated region
      $region45: #{tpu_custom_call.1} parent=5 // pred_check
        _
      $region46: #{tpu_custom_call.1} parent=5 // pred_check_branch
        %245 = sbr.rel (%p242) target = $region48
      $region47: #{tpu_custom_call.1} parent=5 // pred_region
        %s246 = ssub.s32 %s16, 1
        %s247 = smul.u32 2, %s21
        %p248 = scmp.lt.s32.totalorder %s247, 3
        %s249 = scalar_select %p248, %s247, 3
        %s250 = smul.addr %s249, 8
        %s251 = scalar_lea.vmem %s0, %s250
        %p252 = pneg %p42
        %p253 = pneg %p39
        %p254 = pneg %p63
        %p255 = pneg %p60
        %p256 = pneg %p84
        %p257 = pneg %p81
        %p258 = pneg %p105
        %p259 = pneg %p102
        %p260 = pneg %p126
        %p261 = pneg %p123
        %p262 = pneg %p147
        %p263 = pneg %p144
        %p264 = pneg %p168
        %p265 = pneg %p165
        %p266 = pneg %p194
        %p267 = pneg %p191
        %s268 = sand.u32 %s181, 1
        %s269 = scalar_lea.sflag [#allocation3], %s268
        %s270 = sand.u32 %s181, 1
        %s271 = smul.addr %s270, 16
        %s272 = scalar_lea.vmem [#allocation2], %s271
        %s273 = smul.u32 2, %s21
        %p274 = scmp.lt.s32.totalorder %s273, 3
        %s275 = scalar_select %p274, %s273, 3
        %s276 = smul.addr %s275, 8
        %s277 = scalar_lea.vmem %s0, %s276
        %s278 = smul.u32 2, %s21
        %s279 = smul.u32 2, %s21
        %v280 = vld [vmem:[%s277] sm:$0xff]
        %v281 = vld [vmem:[%s277 + $0x8] sm:$0xff]
        %v282 = vld [vmem:[%s1] sm:$0xff]
        %v283 = vld [vmem:[%s1 + $0x8] sm:$0xff]
        %v284 = vld [vmem:[%s1 + $0x10] sm:$0xff]
        %v285 = vld [vmem:[%s1 + $0x18] sm:$0xff]
        %v286 = vld [vmem:[%s3] sm:$0xff]
        %v287 = vld [vmem:[%s3 + $0x8] sm:$0xff]
        %v288 = vld [vmem:[%s3 + $0x10] sm:$0xff]
        %v289 = vld [vmem:[%s3 + $0x18] sm:$0xff]
        %v290 = vld [vmem:[%s5] sm:$0xff]
        %v291 = vld [vmem:[%s5 + $0x8] sm:$0xff]
        %v292 = vld [vmem:[%s2] sm:$0xff]
        %v293 = vld [vmem:[%s2 + $0x8] sm:$0xff]
        %v294 = vld [vmem:[%s2 + $0x10] sm:$0xff]
        %v295 = vld [vmem:[%s2 + $0x18] sm:$0xff]
        %297 = vset.pattern.permute.xlu0 0
        %298 = vperm.xlu0 %297, %v292
        %v299 = vpop.permute.xlu0 %298
        %302 = vset.pattern.permute.xlu0 0
        %303 = vperm.xlu0 %302, %v293
        %v304 = vpop.permute.xlu0 %303
        %307 = vset.pattern.permute.xlu0 0
        %308 = vperm.xlu0 %307, %v294
        %v309 = vpop.permute.xlu0 %308
        %312 = vset.pattern.permute.xlu0 0
        %313 = vperm.xlu0 %312, %v295
        %v314 = vpop.permute.xlu0 %313
        %v316 = vld [vmem:[%s4] sm:$0xff]
        %v317 = vld [vmem:[%s4 + $0x8] sm:$0xff]
        %v318 = vld [vmem:[%s4 + $0x10] sm:$0xff]
        %v319 = vld [vmem:[%s4 + $0x18] sm:$0xff]
        %321 = vset.pattern.permute.xlu0 0
        %322 = vperm.xlu0 %321, %v316
        %v323 = vpop.permute.xlu0 %322
        %326 = vset.pattern.permute.xlu0 0
        %327 = vperm.xlu0 %326, %v317
        %v328 = vpop.permute.xlu0 %327
        %331 = vset.pattern.permute.xlu0 0
        %332 = vperm.xlu0 %331, %v318
        %v333 = vpop.permute.xlu0 %332
        %336 = vset.pattern.permute.xlu0 0
        %337 = vperm.xlu0 %336, %v319
        %v338 = vpop.permute.xlu0 %337
        %v340 = vld [vmem:[%s6] sm:$0xff]
        %v341 = vld [vmem:[%s6 + $0x8] sm:$0xff]
        %343 = vset.pattern.permute.xlu0 0
        %344 = vperm.xlu0 %343, %v340
        %v345 = vpop.permute.xlu0 %344
        %348 = vset.pattern.permute.xlu0 0
        %349 = vperm.xlu0 %348, %v341
        %v350 = vpop.permute.xlu0 %349
        %v352 = vlaneseq
        %v353 = vshrl.u32 %v352, 7
        %v354 = vmax.f32 %v299, 0.0
        %v355 = vmax.f32 %v304, 0.0
        %v356 = vmax.f32 %v309, 0.0
        %v357 = vmax.f32 %v314, 0.0
        %vm358 = vcmask 261120
        %v360 = vsel %vm358, %v286, 0
        %v363 = vsel %vm358, %v287, 0
        %v366 = vsel %vm358, %v288, 0
        %v369 = vsel %vm358, %v289, 0
        %371 = vmatprep.subr.mxu0 %v354
        %372 = vmatpush1.msra.mxu0 %v354
        %373 = vmatprep.subr.mxu0 %v355
        %374 = vmatpush1.msra.mxu0 %v355
        %375 = vmatprep.subr.mxu0 %v356
        %376 = vmatpush1.msra.mxu0 %v356
        %377 = vmatprep.subr.mxu0 %v357
        %378 = vmatpush1.msra.mxu0 %v357
        %379 = vmatprep.subr.mxu0 0.0
        %380 = vmatpush1.msra.mxu0 0.0
        %381 = vmatprep.subr.mxu0 0.0
        %382 = vmatpush1.msra.mxu0 0.0
        %383 = vmatprep.subr.mxu0 0.0
        %384 = vmatpush1.msra.mxu0 0.0
        %385 = vmatprep.subr.mxu0 0.0
        %386 = vmatpush1.msra.mxu0 0.0
        %387 = vmatprep.subr.mxu0 0.0
        %388 = vmatpush1.msra.mxu0 0.0
        %389 = vmatprep.subr.mxu0 0.0
        %390 = vmatpush1.msra.mxu0 0.0
        %391 = vmatprep.subr.mxu0 0.0
        %392 = vmatpush1.msra.mxu0 0.0
        %393 = vmatprep.subr.mxu0 0.0
        %394 = vmatpush1.msra.mxu0 0.0
        %395 = vmatprep.subr.mxu0 0.0
        %396 = vmatpush1.msra.mxu0 0.0
        %397 = vmatprep.subr.mxu0 0.0
        %398 = vmatpush1.msra.mxu0 0.0
        %399 = vmatprep.subr.mxu0 0.0
        %400 = vmatpush1.msra.mxu0 0.0
        %401 = vmatprep.subr.mxu0 0.0
        %402 = vmatpush1.msra.mxu0 0.0
        %403 = vmatprep.subr.mxu0 0.0
        %404 = vmatpush1.msra.mxu0 0.0
        %405 = vmatprep.subr.mxu0 0.0
        %406 = vmatpush1.msra.mxu0 0.0
        %407 = vmatprep.subr.mxu0 0.0
        %408 = vmatpush1.msra.mxu0 0.0
        %409 = vmatprep.subr.mxu0 0.0
        %410 = vmatpush1.msra.mxu0 0.0
        %411 = vmatprep.subr.mxu0 0.0
        %412 = vmatpush1.msra.mxu0 0.0
        %413 = vmatprep.subr.mxu0 0.0
        %414 = vmatpush1.msra.mxu0 0.0
        %415 = vmatprep.subr.mxu0 0.0
        %416 = vmatpush1.msra.mxu0 0.0
        %417 = vmatprep.subr.mxu0 0.0
        %418 = vmatpush1.msra.mxu0 0.0
        %419 = vmatprep.subr.mxu0 0.0
        %420 = vmatpush1.msra.mxu0 0.0
        %421 = vmatprep.subr.mxu0 0.0
        %422 = vmatpush1.msra.mxu0 0.0
        %423 = vmatprep.subr.mxu0 0.0
        %424 = vmatpush1.msra.mxu0 0.0
        %425 = vmatprep.subr.mxu0 0.0
        %426 = vmatpush1.msra.mxu0 0.0
        %427 = vmatprep.subr.mxu0 0.0
        %428 = vmatpush1.msra.mxu0 0.0
        %429 = vmatprep.subr.mxu0 0.0
        %430 = vmatpush1.msra.mxu0 0.0
        %431 = vmatprep.subr.mxu0 0.0
        %432 = vmatpush1.msra.mxu0 0.0
        %433 = vmatprep.subr.mxu0 0.0
        %434 = vmatpush1.msra.mxu0 0.0
        %435 = vmatprep.mubr.f32.mxu0 0.0
        %436 = vmatmul.mubr.f32.gmra.mrb[0].mxu0 %v360
        %v437 = vpop.f32.mrb[0].mxu0
        %v438 = vadd.f32 %v323, %v437
        %v439 = vpop.f32.mrb[0].mxu0
        %v440 = vadd.f32 %v323, %v439
        %441 = vmatprep.mubr.f32.mxu0 0.0
        %442 = vmatmul.mubr.f32.gmra.mrb[0].mxu0 %v363
        %v443 = vpop.f32.mrb[0].mxu0
        %v444 = vadd.f32 %v328, %v443
        %v445 = vpop.f32.mrb[0].mxu0
        %v446 = vadd.f32 %v328, %v445
        %447 = vmatprep.mubr.f32.mxu0 0.0
        %448 = vmatmul.mubr.f32.gmra.mrb[0].mxu0 %v366
        %v449 = vpop.f32.mrb[0].mxu0
        %v450 = vadd.f32 %v333, %v449
        %v451 = vpop.f32.mrb[0].mxu0
        %v452 = vadd.f32 %v333, %v451
        %453 = vmatprep.mubr.f32.mxu0 0.0
        %454 = vmatmul.mubr.f32.gmra.mrb[0].mxu0 %v369
        %v455 = vpop.f32.mrb[0].mxu0
        %v456 = vadd.f32 %v338, %v455
        %v457 = vpop.f32.mrb[0].mxu0
        %v458 = vadd.f32 %v338, %v457
        %459 = vdwg.mxu0
        %v460 = vmax.f32 %v438, 0.0
        %v461 = vmax.f32 %v440, 0.0
        %v462 = vmax.f32 %v444, 0.0
        %v463 = vmax.f32 %v446, 0.0
        %v464 = vmax.f32 %v450, 0.0
        %v465 = vmax.f32 %v452, 0.0
        %v466 = vmax.f32 %v456, 0.0
        %v467 = vmax.f32 %v458, 0.0
        %v469 = vsel %vm358, %v290, 0
        %v472 = vsel %vm358, %v291, 0
        %474 = vmatprep.subr.mxu0 %v461
        %475 = vmatpush1.msra.mxu0 %v460
        %476 = vmatprep.subr.mxu0 %v463
        %477 = vmatpush1.msra.mxu0 %v462
        %478 = vmatprep.subr.mxu0 %v465
        %479 = vmatpush1.msra.mxu0 %v464
        %480 = vmatprep.subr.mxu0 %v467
        %481 = vmatpush1.msra.mxu0 %v466
        %482 = vmatprep.subr.mxu0 0.0
        %483 = vmatpush1.msra.mxu0 0.0
        %484 = vmatprep.subr.mxu0 0.0
        %485 = vmatpush1.msra.mxu0 0.0
        %486 = vmatprep.subr.mxu0 0.0
        %487 = vmatpush1.msra.mxu0 0.0
        %488 = vmatprep.subr.mxu0 0.0
        %489 = vmatpush1.msra.mxu0 0.0
        %490 = vmatprep.subr.mxu0 0.0
        %491 = vmatpush1.msra.mxu0 0.0
        %492 = vmatprep.subr.mxu0 0.0
        %493 = vmatpush1.msra.mxu0 0.0
        %494 = vmatprep.subr.mxu0 0.0
        %495 = vmatpush1.msra.mxu0 0.0
        %496 = vmatprep.subr.mxu0 0.0
        %497 = vmatpush1.msra.mxu0 0.0
        %498 = vmatprep.subr.mxu0 0.0
        %499 = vmatpush1.msra.mxu0 0.0
        %500 = vmatprep.subr.mxu0 0.0
        %501 = vmatpush1.msra.mxu0 0.0
        %502 = vmatprep.subr.mxu0 0.0
        %503 = vmatpush1.msra.mxu0 0.0
        %504 = vmatprep.subr.mxu0 0.0
        %505 = vmatpush1.msra.mxu0 0.0
        %506 = vmatprep.subr.mxu0 0.0
        %507 = vmatpush1.msra.mxu0 0.0
        %508 = vmatprep.subr.mxu0 0.0
        %509 = vmatpush1.msra.mxu0 0.0
        %510 = vmatprep.subr.mxu0 0.0
        %511 = vmatpush1.msra.mxu0 0.0
        %512 = vmatprep.subr.mxu0 0.0
        %513 = vmatpush1.msra.mxu0 0.0
        %514 = vmatprep.subr.mxu0 0.0
        %515 = vmatpush1.msra.mxu0 0.0
        %516 = vmatprep.subr.mxu0 0.0
        %517 = vmatpush1.msra.mxu0 0.0
        %518 = vmatprep.subr.mxu0 0.0
        %519 = vmatpush1.msra.mxu0 0.0
        %520 = vmatprep.subr.mxu0 0.0
        %521 = vmatpush1.msra.mxu0 0.0
        %522 = vmatprep.subr.mxu0 0.0
        %523 = vmatpush1.msra.mxu0 0.0
        %524 = vmatprep.subr.mxu0 0.0
        %525 = vmatpush1.msra.mxu0 0.0
        %526 = vmatprep.subr.mxu0 0.0
        %527 = vmatpush1.msra.mxu0 0.0
        %528 = vmatprep.subr.mxu0 0.0
        %529 = vmatpush1.msra.mxu0 0.0
        %530 = vmatprep.subr.mxu0 0.0
        %531 = vmatpush1.msra.mxu0 0.0
        %532 = vmatprep.subr.mxu0 0.0
        %533 = vmatpush1.msra.mxu0 0.0
        %534 = vmatprep.subr.mxu0 0.0
        %535 = vmatpush1.msra.mxu0 0.0
        %536 = vmatprep.subr.mxu0 0.0
        %537 = vmatpush1.msra.mxu0 0.0
        %538 = vmatprep.mubr.f32.mxu0 0.0
        %539 = vmatmul.mubr.f32.gmra.mrb[0].mxu0 %v469
        %v540 = vpop.f32.mrb[0].mxu0
        %v541 = vadd.f32 %v345, %v540
        %v542 = vpop.f32.mrb[0].mxu0
        %v543 = vadd.f32 %v345, %v542
        %544 = vmatprep.mubr.f32.mxu0 0.0
        %545 = vmatmul.mubr.f32.gmra.mrb[0].mxu0 %v472
        %v546 = vpop.f32.mrb[0].mxu0
        %v547 = vadd.f32 %v350, %v546
        %v548 = vpop.f32.mrb[0].mxu0
        %v549 = vadd.f32 %v350, %v548
        %550 = vdwg.mxu0
        %v551 = vmax.f32 %v547, -5.0
        %v552 = vmax.f32 %v549, -5.0
        %v553 = vmin.f32 %v551, 3.0
        %v554 = vmin.f32 %v552, 3.0
        %v555 = vmul.f32 %v553, 1.442695
        %v556 = vpow.pop %v555
        %v557 = vmul.f32 %v554, 1.442695
        %v558 = vpow.pop %v557
        %v559 = vmul.f32 %v280, %v556
        %v560 = vmul.f32 %v281, %v558
        %v561 = vadd.f32 %v559, %v541
        %v562 = vadd.f32 %v560, %v543
        %vm563 = vcmp.eq.s32.totalorder %v353, 0
        %v564 = vsel %vm563, %v561, 0.0
        %v565 = vsel %vm563, %v562, 0.0
        %vm566 = vcmask 64512
        %v568 = vsel %vm566, %v282, 0
        %v571 = vsel %vm566, %v283, 0
        %v574 = vsel %vm566, %v284, 0
        %v577 = vsel %vm566, %v285, 0
        %579 = vmatprep.subr.mxu0 %v565
        %580 = vmatpush1.msra.mxu0 %v564
        %581 = vmatprep.subr.mxu0 0.0
        %582 = vmatpush1.msra.mxu0 0.0
        %583 = vmatprep.subr.mxu0 0.0
        %584 = vmatpush1.msra.mxu0 0.0
        %585 = vmatprep.subr.mxu0 0.0
        %586 = vmatpush1.msra.mxu0 0.0
        %587 = vmatprep.subr.mxu0 0.0
        %588 = vmatpush1.msra.mxu0 0.0
        %589 = vmatprep.subr.mxu0 0.0
        %590 = vmatpush1.msra.mxu0 0.0
        %591 = vmatprep.subr.mxu0 0.0
        %592 = vmatpush1.msra.mxu0 0.0
        %593 = vmatprep.subr.mxu0 0.0
        %594 = vmatpush1.msra.mxu0 0.0
        %595 = vmatprep.subr.mxu0 0.0
        %596 = vmatpush1.msra.mxu0 0.0
        %597 = vmatprep.subr.mxu0 0.0
        %598 = vmatpush1.msra.mxu0 0.0
        %599 = vmatprep.subr.mxu0 0.0
        %600 = vmatpush1.msra.mxu0 0.0
        %601 = vmatprep.subr.mxu0 0.0
        %602 = vmatpush1.msra.mxu0 0.0
        %603 = vmatprep.subr.mxu0 0.0
        %604 = vmatpush1.msra.mxu0 0.0
        %605 = vmatprep.subr.mxu0 0.0
        %606 = vmatpush1.msra.mxu0 0.0
        %607 = vmatprep.subr.mxu0 0.0
        %608 = vmatpush1.msra.mxu0 0.0
        %609 = vmatprep.subr.mxu0 0.0
        %610 = vmatpush1.msra.mxu0 0.0
        %611 = vmatprep.subr.mxu0 0.0
        %612 = vmatpush1.msra.mxu0 0.0
        %613 = vmatprep.subr.mxu0 0.0
        %614 = vmatpush1.msra.mxu0 0.0
        %615 = vmatprep.subr.mxu0 0.0
        %616 = vmatpush1.msra.mxu0 0.0
        %617 = vmatprep.subr.mxu0 0.0
        %618 = vmatpush1.msra.mxu0 0.0
        %619 = vmatprep.subr.mxu0 0.0
        %620 = vmatpush1.msra.mxu0 0.0
        %621 = vmatprep.subr.mxu0 0.0
        %622 = vmatpush1.msra.mxu0 0.0
        %623 = vmatprep.subr.mxu0 0.0
        %624 = vmatpush1.msra.mxu0 0.0
        %625 = vmatprep.subr.mxu0 0.0
        %626 = vmatpush1.msra.mxu0 0.0
        %627 = vmatprep.subr.mxu0 0.0
        %628 = vmatpush1.msra.mxu0 0.0
        %629 = vmatprep.subr.mxu0 0.0
        %630 = vmatpush1.msra.mxu0 0.0
        %631 = vmatprep.subr.mxu0 0.0
        %632 = vmatpush1.msra.mxu0 0.0
        %633 = vmatprep.subr.mxu0 0.0
        %634 = vmatpush1.msra.mxu0 0.0
        %635 = vmatprep.subr.mxu0 0.0
        %636 = vmatpush1.msra.mxu0 0.0
        %637 = vmatprep.subr.mxu0 0.0
        %638 = vmatpush1.msra.mxu0 0.0
        %639 = vmatprep.subr.mxu0 0.0
        %640 = vmatpush1.msra.mxu0 0.0
        %641 = vmatprep.subr.mxu0 0.0
        %642 = vmatpush1.msra.mxu0 0.0
        %643 = vmatprep.mubr.f32.mxu0 0.0
        %644 = vmatmul.mubr.f32.gmra.mrb[0].mxu0 %v568
        %v645 = vpop.f32.mrb[0].mxu0
        %v646 = vadd.f32 %v299, %v645
        %v647 = vpop.f32.mrb[0].mxu0
        %v648 = vadd.f32 %v299, %v647
        %649 = vmatprep.mubr.f32.mxu0 0.0
        %650 = vmatmul.mubr.f32.gmra.mrb[0].mxu0 %v571
        %v651 = vpop.f32.mrb[0].mxu0
        %v652 = vadd.f32 %v304, %v651
        %v653 = vpop.f32.mrb[0].mxu0
        %v654 = vadd.f32 %v304, %v653
        %655 = vmatprep.mubr.f32.mxu0 0.0
        %656 = vmatmul.mubr.f32.gmra.mrb[0].mxu0 %v574
        %v657 = vpop.f32.mrb[0].mxu0
        %v658 = vadd.f32 %v309, %v657
        %v659 = vpop.f32.mrb[0].mxu0
        %v660 = vadd.f32 %v309, %v659
        %661 = vmatprep.mubr.f32.mxu0 0.0
        %662 = vmatmul.mubr.f32.gmra.mrb[0].mxu0 %v577
        %v663 = vpop.f32.mrb[0].mxu0
        %v664 = vadd.f32 %v314, %v663
        %v665 = vpop.f32.mrb[0].mxu0
        %v666 = vadd.f32 %v314, %v665
        %667 = vdwg.mxu0
        %v668 = vmax.f32 %v646, 0.0
        %v669 = vmax.f32 %v648, 0.0
        %v670 = vmax.f32 %v652, 0.0
        %v671 = vmax.f32 %v654, 0.0
        %v672 = vmax.f32 %v658, 0.0
        %v673 = vmax.f32 %v660, 0.0
        %v674 = vmax.f32 %v664, 0.0
        %v675 = vmax.f32 %v666, 0.0
        %676 = vmatprep.subr.mxu0 %v669
        %677 = vmatpush1.msra.mxu0 %v668
        %678 = vmatprep.subr.mxu0 %v671
        %679 = vmatpush1.msra.mxu0 %v670
        %680 = vmatprep.subr.mxu0 %v673
        %681 = vmatpush1.msra.mxu0 %v672
        %682 = vmatprep.subr.mxu0 %v675
        %683 = vmatpush1.msra.mxu0 %v674
        %684 = vmatprep.subr.mxu0 0.0
        %685 = vmatpush1.msra.mxu0 0.0
        %686 = vmatprep.subr.mxu0 0.0
        %687 = vmatpush1.msra.mxu0 0.0
        %688 = vmatprep.subr.mxu0 0.0
        %689 = vmatpush1.msra.mxu0 0.0
        %690 = vmatprep.subr.mxu0 0.0
        %691 = vmatpush1.msra.mxu0 0.0
        %692 = vmatprep.subr.mxu0 0.0
        %693 = vmatpush1.msra.mxu0 0.0
        %694 = vmatprep.subr.mxu0 0.0
        %695 = vmatpush1.msra.mxu0 0.0
        %696 = vmatprep.subr.mxu0 0.0
        %697 = vmatpush1.msra.mxu0 0.0
        %698 = vmatprep.subr.mxu0 0.0
        %699 = vmatpush1.msra.mxu0 0.0
        %700 = vmatprep.subr.mxu0 0.0
        %701 = vmatpush1.msra.mxu0 0.0
        %702 = vmatprep.subr.mxu0 0.0
        %703 = vmatpush1.msra.mxu0 0.0
        %704 = vmatprep.subr.mxu0 0.0
        %705 = vmatpush1.msra.mxu0 0.0
        %706 = vmatprep.subr.mxu0 0.0
        %707 = vmatpush1.msra.mxu0 0.0
        %708 = vmatprep.subr.mxu0 0.0
        %709 = vmatpush1.msra.mxu0 0.0
        %710 = vmatprep.subr.mxu0 0.0
        %711 = vmatpush1.msra.mxu0 0.0
        %712 = vmatprep.subr.mxu0 0.0
        %713 = vmatpush1.msra.mxu0 0.0
        %714 = vmatprep.subr.mxu0 0.0
        %715 = vmatpush1.msra.mxu0 0.0
        %716 = vmatprep.subr.mxu0 0.0
        %717 = vmatpush1.msra.mxu0 0.0
        %718 = vmatprep.subr.mxu0 0.0
        %719 = vmatpush1.msra.mxu0 0.0
        %720 = vmatprep.subr.mxu0 0.0
        %721 = vmatpush1.msra.mxu0 0.0
        %722 = vmatprep.subr.mxu0 0.0
        %723 = vmatpush1.msra.mxu0 0.0
        %724 = vmatprep.subr.mxu0 0.0
        %725 = vmatpush1.msra.mxu0 0.0
        %726 = vmatprep.subr.mxu0 0.0
        %727 = vmatpush1.msra.mxu0 0.0
        %728 = vmatprep.subr.mxu0 0.0
        %729 = vmatpush1.msra.mxu0 0.0
        %730 = vmatprep.subr.mxu0 0.0
        %731 = vmatpush1.msra.mxu0 0.0
        %732 = vmatprep.subr.mxu0 0.0
        %733 = vmatpush1.msra.mxu0 0.0
        %734 = vmatprep.subr.mxu0 0.0
        %735 = vmatpush1.msra.mxu0 0.0
        %736 = vmatprep.subr.mxu0 0.0
        %737 = vmatpush1.msra.mxu0 0.0
        %738 = vmatprep.subr.mxu0 0.0
        %739 = vmatpush1.msra.mxu0 0.0
        %740 = vmatprep.mubr.f32.mxu0 0.0
        %741 = vmatmul.mubr.f32.gmra.mrb[0].mxu0 %v360
        %v742 = vpop.f32.mrb[0].mxu0
        %v743 = vadd.f32 %v323, %v742
        %v744 = vpop.f32.mrb[0].mxu0
        %v745 = vadd.f32 %v323, %v744
        %746 = vmatprep.mubr.f32.mxu0 0.0
        %747 = vmatmul.mubr.f32.gmra.mrb[0].mxu0 %v363
        %v748 = vpop.f32.mrb[0].mxu0
        %v749 = vadd.f32 %v328, %v748
        %v750 = vpop.f32.mrb[0].mxu0
        %v751 = vadd.f32 %v328, %v750
        %752 = vmatprep.mubr.f32.mxu0 0.0
        %753 = vmatmul.mubr.f32.gmra.mrb[0].mxu0 %v366
        %v754 = vpop.f32.mrb[0].mxu0
        %v755 = vadd.f32 %v333, %v754
        %v756 = vpop.f32.mrb[0].mxu0
        %v757 = vadd.f32 %v333, %v756
        %758 = vmatprep.mubr.f32.mxu0 0.0
        %759 = vmatmul.mubr.f32.gmra.mrb[0].mxu0 %v369
        %v760 = vpop.f32.mrb[0].mxu0
        %v761 = vadd.f32 %v338, %v760
        %v762 = vpop.f32.mrb[0].mxu0
        %v763 = vadd.f32 %v338, %v762
        %764 = vdwg.mxu0
        %v765 = vmax.f32 %v743, 0.0
        %v766 = vmax.f32 %v745, 0.0
        %v767 = vmax.f32 %v749, 0.0
        %v768 = vmax.f32 %v751, 0.0
        %v769 = vmax.f32 %v755, 0.0
        %v770 = vmax.f32 %v757, 0.0
        %v771 = vmax.f32 %v761, 0.0
        %v772 = vmax.f32 %v763, 0.0
        %773 = vmatprep.subr.mxu0 %v766
        %774 = vmatpush1.msra.mxu0 %v765
        %775 = vmatprep.subr.mxu0 %v768
        %776 = vmatpush1.msra.mxu0 %v767
        %777 = vmatprep.subr.mxu0 %v770
        %778 = vmatpush1.msra.mxu0 %v769
        %779 = vmatprep.subr.mxu0 %v772
        %780 = vmatpush1.msra.mxu0 %v771
        %781 = vmatprep.subr.mxu0 0.0
        %782 = vmatpush1.msra.mxu0 0.0
        %783 = vmatprep.subr.mxu0 0.0
        %784 = vmatpush1.msra.mxu0 0.0
        %785 = vmatprep.subr.mxu0 0.0
        %786 = vmatpush1.msra.mxu0 0.0
        %787 = vmatprep.subr.mxu0 0.0
        %788 = vmatpush1.msra.mxu0 0.0
        %789 = vmatprep.subr.mxu0 0.0
        %790 = vmatpush1.msra.mxu0 0.0
        %791 = vmatprep.subr.mxu0 0.0
        %792 = vmatpush1.msra.mxu0 0.0
        %793 = vmatprep.subr.mxu0 0.0
        %794 = vmatpush1.msra.mxu0 0.0
        %795 = vmatprep.subr.mxu0 0.0
        %796 = vmatpush1.msra.mxu0 0.0
        %797 = vmatprep.subr.mxu0 0.0
        %798 = vmatpush1.msra.mxu0 0.0
        %799 = vmatprep.subr.mxu0 0.0
        %800 = vmatpush1.msra.mxu0 0.0
        %801 = vmatprep.subr.mxu0 0.0
        %802 = vmatpush1.msra.mxu0 0.0
        %803 = vmatprep.subr.mxu0 0.0
        %804 = vmatpush1.msra.mxu0 0.0
        %805 = vmatprep.subr.mxu0 0.0
        %806 = vmatpush1.msra.mxu0 0.0
        %807 = vmatprep.subr.mxu0 0.0
        %808 = vmatpush1.msra.mxu0 0.0
        %809 = vmatprep.subr.mxu0 0.0
        %810 = vmatpush1.msra.mxu0 0.0
        %811 = vmatprep.subr.mxu0 0.0
        %812 = vmatpush1.msra.mxu0 0.0
        %813 = vmatprep.subr.mxu0 0.0
        %814 = vmatpush1.msra.mxu0 0.0
        %815 = vmatprep.subr.mxu0 0.0
        %816 = vmatpush1.msra.mxu0 0.0
        %817 = vmatprep.subr.mxu0 0.0
        %818 = vmatpush1.msra.mxu0 0.0
        %819 = vmatprep.subr.mxu0 0.0
        %820 = vmatpush1.msra.mxu0 0.0
        %821 = vmatprep.subr.mxu0 0.0
        %822 = vmatpush1.msra.mxu0 0.0
        %823 = vmatprep.subr.mxu0 0.0
        %824 = vmatpush1.msra.mxu0 0.0
        %825 = vmatprep.subr.mxu0 0.0
        %826 = vmatpush1.msra.mxu0 0.0
        %827 = vmatprep.subr.mxu0 0.0
        %828 = vmatpush1.msra.mxu0 0.0
        %829 = vmatprep.subr.mxu0 0.0
        %830 = vmatpush1.msra.mxu0 0.0
        %831 = vmatprep.subr.mxu0 0.0
        %832 = vmatpush1.msra.mxu0 0.0
        %833 = vmatprep.subr.mxu0 0.0
        %834 = vmatpush1.msra.mxu0 0.0
        %835 = vmatprep.subr.mxu0 0.0
        %836 = vmatpush1.msra.mxu0 0.0
        %837 = vmatprep.mubr.f32.mxu0 0.0
        %838 = vmatmul.mubr.f32.gmra.mrb[0].mxu0 %v469
        %v839 = vpop.f32.mrb[0].mxu0
        %v840 = vadd.f32 %v345, %v839
        %v841 = vpop.f32.mrb[0].mxu0
        %v842 = vadd.f32 %v345, %v841
        %843 = vmatprep.mubr.f32.mxu0 0.0
        %844 = vmatmul.mubr.f32.gmra.mrb[0].mxu0 %v472
        %v845 = vpop.f32.mrb[0].mxu0
        %v846 = vadd.f32 %v350, %v845
        %v847 = vpop.f32.mrb[0].mxu0
        %v848 = vadd.f32 %v350, %v847
        %849 = vdwg.mxu0
        %v850 = vmax.f32 %v846, -5.0
        %v851 = vmax.f32 %v848, -5.0
        %v852 = vmin.f32 %v850, 3.0
        %v853 = vmin.f32 %v851, 3.0
        %v854 = vmul.f32 %v852, 1.442695
        %v855 = vpow.pop %v854
        %v856 = vmul.f32 %v853, 1.442695
        %v857 = vpow.pop %v856
        %v858 = vmul.f32 %v280, %v855
        %v859 = vmul.f32 %v281, %v857
        %v860 = vadd.f32 %v858, %v840
        %v861 = vadd.f32 %v859, %v842
        %vm862 = vcmp.eq.s32.totalorder %v353, 1
        %v863 = vsel %vm862, %v860, %v564
        %v864 = vsel %vm862, %v861, %v565
        %865 = vmatprep.subr.mxu0 %v864
        %866 = vmatpush1.msra.mxu0 %v863
        %867 = vmatprep.subr.mxu0 0.0
        %868 = vmatpush1.msra.mxu0 0.0
        %869 = vmatprep.subr.mxu0 0.0
        %870 = vmatpush1.msra.mxu0 0.0
        %871 = vmatprep.subr.mxu0 0.0
        %872 = vmatpush1.msra.mxu0 0.0
        %873 = vmatprep.subr.mxu0 0.0
        %874 = vmatpush1.msra.mxu0 0.0
        %875 = vmatprep.subr.mxu0 0.0
        %876 = vmatpush1.msra.mxu0 0.0
        %877 = vmatprep.subr.mxu0 0.0
        %878 = vmatpush1.msra.mxu0 0.0
        %879 = vmatprep.subr.mxu0 0.0
        %880 = vmatpush1.msra.mxu0 0.0
        %881 = vmatprep.subr.mxu0 0.0
        %882 = vmatpush1.msra.mxu0 0.0
        %883 = vmatprep.subr.mxu0 0.0
        %884 = vmatpush1.msra.mxu0 0.0
        %885 = vmatprep.subr.mxu0 0.0
        %886 = vmatpush1.msra.mxu0 0.0
        %887 = vmatprep.subr.mxu0 0.0
        %888 = vmatpush1.msra.mxu0 0.0
        %889 = vmatprep.subr.mxu0 0.0
        %890 = vmatpush1.msra.mxu0 0.0
        %891 = vmatprep.subr.mxu0 0.0
        %892 = vmatpush1.msra.mxu0 0.0
        %893 = vmatprep.subr.mxu0 0.0
        %894 = vmatpush1.msra.mxu0 0.0
        %895 = vmatprep.subr.mxu0 0.0
        %896 = vmatpush1.msra.mxu0 0.0
        %897 = vmatprep.subr.mxu0 0.0
        %898 = vmatpush1.msra.mxu0 0.0
        %899 = vmatprep.subr.mxu0 0.0
        %900 = vmatpush1.msra.mxu0 0.0
        %901 = vmatprep.subr.mxu0 0.0
        %902 = vmatpush1.msra.mxu0 0.0
        %903 = vmatprep.subr.mxu0 0.0
        %904 = vmatpush1.msra.mxu0 0.0
        %905 = vmatprep.subr.mxu0 0.0
        %906 = vmatpush1.msra.mxu0 0.0
        %907 = vmatprep.subr.mxu0 0.0
        %908 = vmatpush1.msra.mxu0 0.0
        %909 = vmatprep.subr.mxu0 0.0
        %910 = vmatpush1.msra.mxu0 0.0
        %911 = vmatprep.subr.mxu0 0.0
        %912 = vmatpush1.msra.mxu0 0.0
        %913 = vmatprep.subr.mxu0 0.0
        %914 = vmatpush1.msra.mxu0 0.0
        %915 = vmatprep.subr.mxu0 0.0
        %916 = vmatpush1.msra.mxu0 0.0
        %917 = vmatprep.subr.mxu0 0.0
        %918 = vmatpush1.msra.mxu0 0.0
        %919 = vmatprep.subr.mxu0 0.0
        %920 = vmatpush1.msra.mxu0 0.0
        %921 = vmatprep.subr.mxu0 0.0
        %922 = vmatpush1.msra.mxu0 0.0
        %923 = vmatprep.subr.mxu0 0.0
        %924 = vmatpush1.msra.mxu0 0.0
        %925 = vmatprep.subr.mxu0 0.0
        %926 = vmatpush1.msra.mxu0 0.0
        %927 = vmatprep.subr.mxu0 0.0
        %928 = vmatpush1.msra.mxu0 0.0
        %929 = vmatprep.mubr.f32.mxu0 0.0
        %930 = vmatmul.mubr.f32.gmra.mrb[0].mxu0 %v568
        %v931 = vpop.f32.mrb[0].mxu0
        %v932 = vadd.f32 %v299, %v931
        %v933 = vpop.f32.mrb[0].mxu0
        %v934 = vadd.f32 %v299, %v933
        %935 = vmatprep.mubr.f32.mxu0 0.0
        %936 = vmatmul.mubr.f32.gmra.mrb[0].mxu0 %v571
        %v937 = vpop.f32.mrb[0].mxu0
        %v938 = vadd.f32 %v304, %v937
        %v939 = vpop.f32.mrb[0].mxu0
        %v940 = vadd.f32 %v304, %v939
        %941 = vmatprep.mubr.f32.mxu0 0.0
        %942 = vmatmul.mubr.f32.gmra.mrb[0].mxu0 %v574
        %v943 = vpop.f32.mrb[0].mxu0
        %v944 = vadd.f32 %v309, %v943
        %v945 = vpop.f32.mrb[0].mxu0
        %v946 = vadd.f32 %v309, %v945
        %947 = vmatprep.mubr.f32.mxu0 0.0
        %948 = vmatmul.mubr.f32.gmra.mrb[0].mxu0 %v577
        %v949 = vpop.f32.mrb[0].mxu0
        %v950 = vadd.f32 %v314, %v949
        %v951 = vpop.f32.mrb[0].mxu0
        %v952 = vadd.f32 %v314, %v951
        %953 = vdwg.mxu0
        %v954 = vmax.f32 %v932, 0.0
        %v955 = vmax.f32 %v934, 0.0
        %v956 = vmax.f32 %v938, 0.0
        %v957 = vmax.f32 %v940, 0.0
        %v958 = vmax.f32 %v944, 0.0
        %v959 = vmax.f32 %v946, 0.0
        %v960 = vmax.f32 %v950, 0.0
        %v961 = vmax.f32 %v952, 0.0
        %962 = vmatprep.subr.mxu0 %v955
        %963 = vmatpush1.msra.mxu0 %v954
        %964 = vmatprep.subr.mxu0 %v957
        %965 = vmatpush1.msra.mxu0 %v956
        %966 = vmatprep.subr.mxu0 %v959
        %967 = vmatpush1.msra.mxu0 %v958
        %968 = vmatprep.subr.mxu0 %v961
        %969 = vmatpush1.msra.mxu0 %v960
        %970 = vmatprep.subr.mxu0 0.0
        %971 = vmatpush1.msra.mxu0 0.0
        %972 = vmatprep.subr.mxu0 0.0
        %973 = vmatpush1.msra.mxu0 0.0
        %974 = vmatprep.subr.mxu0 0.0
        %975 = vmatpush1.msra.mxu0 0.0
        %976 = vmatprep.subr.mxu0 0.0
        %977 = vmatpush1.msra.mxu0 0.0
        %978 = vmatprep.subr.mxu0 0.0
        %979 = vmatpush1.msra.mxu0 0.0
        %980 = vmatprep.subr.mxu0 0.0
        %981 = vmatpush1.msra.mxu0 0.0
        %982 = vmatprep.subr.mxu0 0.0
        %983 = vmatpush1.msra.mxu0 0.0
        %984 = vmatprep.subr.mxu0 0.0
        %985 = vmatpush1.msra.mxu0 0.0
        %986 = vmatprep.subr.mxu0 0.0
        %987 = vmatpush1.msra.mxu0 0.0
        %988 = vmatprep.subr.mxu0 0.0
        %989 = vmatpush1.msra.mxu0 0.0
        %990 = vmatprep.subr.mxu0 0.0
        %991 = vmatpush1.msra.mxu0 0.0
        %992 = vmatprep.subr.mxu0 0.0
        %993 = vmatpush1.msra.mxu0 0.0
        %994 = vmatprep.subr.mxu0 0.0
        %995 = vmatpush1.msra.mxu0 0.0
        %996 = vmatprep.subr.mxu0 0.0
        %997 = vmatpush1.msra.mxu0 0.0
        %998 = vmatprep.subr.mxu0 0.0
        %999 = vmatpush1.msra.mxu0 0.0
        %1000 = vmatprep.subr.mxu0 0.0
        %1001 = vmatpush1.msra.mxu0 0.0
        %1002 = vmatprep.subr.mxu0 0.0
        %1003 = vmatpush1.msra.mxu0 0.0
        %1004 = vmatprep.subr.mxu0 0.0
        %1005 = vmatpush1.msra.mxu0 0.0
        %1006 = vmatprep.subr.mxu0 0.0
        %1007 = vmatpush1.msra.mxu0 0.0
        %1008 = vmatprep.subr.mxu0 0.0
        %1009 = vmatpush1.msra.mxu0 0.0
        %1010 = vmatprep.subr.mxu0 0.0
        %1011 = vmatpush1.msra.mxu0 0.0
        %1012 = vmatprep.subr.mxu0 0.0
        %1013 = vmatpush1.msra.mxu0 0.0
        %1014 = vmatprep.subr.mxu0 0.0
        %1015 = vmatpush1.msra.mxu0 0.0
        %1016 = vmatprep.subr.mxu0 0.0
        %1017 = vmatpush1.msra.mxu0 0.0
        %1018 = vmatprep.subr.mxu0 0.0
        %1019 = vmatpush1.msra.mxu0 0.0
        %1020 = vmatprep.subr.mxu0 0.0
        %1021 = vmatpush1.msra.mxu0 0.0
        %1022 = vmatprep.subr.mxu0 0.0
        %1023 = vmatpush1.msra.mxu0 0.0
        %1024 = vmatprep.subr.mxu0 0.0
        %1025 = vmatpush1.msra.mxu0 0.0
        %1026 = vmatprep.mubr.f32.mxu0 0.0
        %1027 = vmatmul.mubr.f32.gmra.mrb[0].mxu0 %v360
        %v1028 = vpop.f32.mrb[0].mxu0
        %v1029 = vadd.f32 %v323, %v1028
        %v1030 = vpop.f32.mrb[0].mxu0
        %v1031 = vadd.f32 %v323, %v1030
        %1032 = vmatprep.mubr.f32.mxu0 0.0
        %1033 = vmatmul.mubr.f32.gmra.mrb[0].mxu0 %v363
        %v1034 = vpop.f32.mrb[0].mxu0
        %v1035 = vadd.f32 %v328, %v1034
        %v1036 = vpop.f32.mrb[0].mxu0
        %v1037 = vadd.f32 %v328, %v1036
        %1038 = vmatprep.mubr.f32.mxu0 0.0
        %1039 = vmatmul.mubr.f32.gmra.mrb[0].mxu0 %v366
        %v1040 = vpop.f32.mrb[0].mxu0
        %v1041 = vadd.f32 %v333, %v1040
        %v1042 = vpop.f32.mrb[0].mxu0
        %v1043 = vadd.f32 %v333, %v1042
        %1044 = vmatprep.mubr.f32.mxu0 0.0
        %1045 = vmatmul.mubr.f32.gmra.mrb[0].mxu0 %v369
        %v1046 = vpop.f32.mrb[0].mxu0
        %v1047 = vadd.f32 %v338, %v1046
        %v1048 = vpop.f32.mrb[0].mxu0
        %v1049 = vadd.f32 %v338, %v1048
        %1050 = vdwg.mxu0
        %v1051 = vmax.f32 %v1029, 0.0
        %v1052 = vmax.f32 %v1031, 0.0
        %v1053 = vmax.f32 %v1035, 0.0
        %v1054 = vmax.f32 %v1037, 0.0
        %v1055 = vmax.f32 %v1041, 0.0
        %v1056 = vmax.f32 %v1043, 0.0
        %v1057 = vmax.f32 %v1047, 0.0
        %v1058 = vmax.f32 %v1049, 0.0
        %1059 = vmatprep.subr.mxu0 %v1052
        %1060 = vmatpush1.msra.mxu0 %v1051
        %1061 = vmatprep.subr.mxu0 %v1054
        %1062 = vmatpush1.msra.mxu0 %v1053
        %1063 = vmatprep.subr.mxu0 %v1056
        %1064 = vmatpush1.msra.mxu0 %v1055
        %1065 = vmatprep.subr.mxu0 %v1058
        %1066 = vmatpush1.msra.mxu0 %v1057
        %1067 = vmatprep.subr.mxu0 0.0
        %1068 = vmatpush1.msra.mxu0 0.0
        %1069 = vmatprep.subr.mxu0 0.0
        %1070 = vmatpush1.msra.mxu0 0.0
        %1071 = vmatprep.subr.mxu0 0.0
        %1072 = vmatpush1.msra.mxu0 0.0
        %1073 = vmatprep.subr.mxu0 0.0
        %1074 = vmatpush1.msra.mxu0 0.0
        %1075 = vmatprep.subr.mxu0 0.0
        %1076 = vmatpush1.msra.mxu0 0.0
        %1077 = vmatprep.subr.mxu0 0.0
        %1078 = vmatpush1.msra.mxu0 0.0
        %1079 = vmatprep.subr.mxu0 0.0
        %1080 = vmatpush1.msra.mxu0 0.0
        %1081 = vmatprep.subr.mxu0 0.0
        %1082 = vmatpush1.msra.mxu0 0.0
        %1083 = vmatprep.subr.mxu0 0.0
        %1084 = vmatpush1.msra.mxu0 0.0
        %1085 = vmatprep.subr.mxu0 0.0
        %1086 = vmatpush1.msra.mxu0 0.0
        %1087 = vmatprep.subr.mxu0 0.0
        %1088 = vmatpush1.msra.mxu0 0.0
        %1089 = vmatprep.subr.mxu0 0.0
        %1090 = vmatpush1.msra.mxu0 0.0
        %1091 = vmatprep.subr.mxu0 0.0
        %1092 = vmatpush1.msra.mxu0 0.0
        %1093 = vmatprep.subr.mxu0 0.0
        %1094 = vmatpush1.msra.mxu0 0.0
        %1095 = vmatprep.subr.mxu0 0.0
        %1096 = vmatpush1.msra.mxu0 0.0
        %1097 = vmatprep.subr.mxu0 0.0
        %1098 = vmatpush1.msra.mxu0 0.0
        %1099 = vmatprep.subr.mxu0 0.0
        %1100 = vmatpush1.msra.mxu0 0.0
        %1101 = vmatprep.subr.mxu0 0.0
        %1102 = vmatpush1.msra.mxu0 0.0
        %1103 = vmatprep.subr.mxu0 0.0
        %1104 = vmatpush1.msra.mxu0 0.0
        %1105 = vmatprep.subr.mxu0 0.0
        %1106 = vmatpush1.msra.mxu0 0.0
        %1107 = vmatprep.subr.mxu0 0.0
        %1108 = vmatpush1.msra.mxu0 0.0
        %1109 = vmatprep.subr.mxu0 0.0
        %1110 = vmatpush1.msra.mxu0 0.0
        %1111 = vmatprep.subr.mxu0 0.0
        %1112 = vmatpush1.msra.mxu0 0.0
        %1113 = vmatprep.subr.mxu0 0.0
        %1114 = vmatpush1.msra.mxu0 0.0
        %1115 = vmatprep.subr.mxu0 0.0
        %1116 = vmatpush1.msra.mxu0 0.0
        %1117 = vmatprep.subr.mxu0 0.0
        %1118 = vmatpush1.msra.mxu0 0.0
        %1119 = vmatprep.subr.mxu0 0.0
        %1120 = vmatpush1.msra.mxu0 0.0
        %1121 = vmatprep.subr.mxu0 0.0
        %1122 = vmatpush1.msra.mxu0 0.0
        %1123 = vmatprep.mubr.f32.mxu0 0.0
        %1124 = vmatmul.mubr.f32.gmra.mrb[0].mxu0 %v469
        %v1125 = vpop.f32.mrb[0].mxu0
        %v1126 = vadd.f32 %v345, %v1125
        %v1127 = vpop.f32.mrb[0].mxu0
        %v1128 = vadd.f32 %v345, %v1127
        %1129 = vmatprep.mubr.f32.mxu0 0.0
        %1130 = vmatmul.mubr.f32.gmra.mrb[0].mxu0 %v472
        %v1131 = vpop.f32.mrb[0].mxu0
        %v1132 = vadd.f32 %v350, %v1131
        %v1133 = vpop.f32.mrb[0].mxu0
        %v1134 = vadd.f32 %v350, %v1133
        %1135 = vdwg.mxu0
        %v1136 = vmax.f32 %v1132, -5.0
        %v1137 = vmax.f32 %v1134, -5.0
        %v1138 = vmin.f32 %v1136, 3.0
        %v1139 = vmin.f32 %v1137, 3.0
        %v1140 = vmul.f32 %v1138, 1.442695
        %v1141 = vpow.pop %v1140
        %v1142 = vmul.f32 %v1139, 1.442695
        %v1143 = vpow.pop %v1142
        %v1144 = vmul.f32 %v280, %v1141
        %v1145 = vmul.f32 %v281, %v1143
        %v1146 = vadd.f32 %v1144, %v1126
        %v1147 = vadd.f32 %v1145, %v1128
        %vm1148 = vcmp.eq.s32.totalorder %v353, 2
        %v1149 = vsel %vm1148, %v1146, %v863
        %v1150 = vsel %vm1148, %v1147, %v864
        %1151 = vmatprep.subr.mxu0 %v1150
        %1152 = vmatpush1.msra.mxu0 %v1149
        %1153 = vmatprep.subr.mxu0 0.0
        %1154 = vmatpush1.msra.mxu0 0.0
        %1155 = vmatprep.subr.mxu0 0.0
        %1156 = vmatpush1.msra.mxu0 0.0
        %1157 = vmatprep.subr.mxu0 0.0
        %1158 = vmatpush1.msra.mxu0 0.0
        %1159 = vmatprep.subr.mxu0 0.0
        %1160 = vmatpush1.msra.mxu0 0.0
        %1161 = vmatprep.subr.mxu0 0.0
        %1162 = vmatpush1.msra.mxu0 0.0
        %1163 = vmatprep.subr.mxu0 0.0
        %1164 = vmatpush1.msra.mxu0 0.0
        %1165 = vmatprep.subr.mxu0 0.0
        %1166 = vmatpush1.msra.mxu0 0.0
        %1167 = vmatprep.subr.mxu0 0.0
        %1168 = vmatpush1.msra.mxu0 0.0
        %1169 = vmatprep.subr.mxu0 0.0
        %1170 = vmatpush1.msra.mxu0 0.0
        %1171 = vmatprep.subr.mxu0 0.0
        %1172 = vmatpush1.msra.mxu0 0.0
        %1173 = vmatprep.subr.mxu0 0.0
        %1174 = vmatpush1.msra.mxu0 0.0
        %1175 = vmatprep.subr.mxu0 0.0
        %1176 = vmatpush1.msra.mxu0 0.0
        %1177 = vmatprep.subr.mxu0 0.0
        %1178 = vmatpush1.msra.mxu0 0.0
        %1179 = vmatprep.subr.mxu0 0.0
        %1180 = vmatpush1.msra.mxu0 0.0
        %1181 = vmatprep.subr.mxu0 0.0
        %1182 = vmatpush1.msra.mxu0 0.0
        %1183 = vmatprep.subr.mxu0 0.0
        %1184 = vmatpush1.msra.mxu0 0.0
        %1185 = vmatprep.subr.mxu0 0.0
        %1186 = vmatpush1.msra.mxu0 0.0
        %1187 = vmatprep.subr.mxu0 0.0
        %1188 = vmatpush1.msra.mxu0 0.0
        %1189 = vmatprep.subr.mxu0 0.0
        %1190 = vmatpush1.msra.mxu0 0.0
        %1191 = vmatprep.subr.mxu0 0.0
        %1192 = vmatpush1.msra.mxu0 0.0
        %1193 = vmatprep.subr.mxu0 0.0
        %1194 = vmatpush1.msra.mxu0 0.0
        %1195 = vmatprep.subr.mxu0 0.0
        %1196 = vmatpush1.msra.mxu0 0.0
        %1197 = vmatprep.subr.mxu0 0.0
        %1198 = vmatpush1.msra.mxu0 0.0
        %1199 = vmatprep.subr.mxu0 0.0
        %1200 = vmatpush1.msra.mxu0 0.0
        %1201 = vmatprep.subr.mxu0 0.0
        %1202 = vmatpush1.msra.mxu0 0.0
        %1203 = vmatprep.subr.mxu0 0.0
        %1204 = vmatpush1.msra.mxu0 0.0
        %1205 = vmatprep.subr.mxu0 0.0
        %1206 = vmatpush1.msra.mxu0 0.0
        %1207 = vmatprep.subr.mxu0 0.0
        %1208 = vmatpush1.msra.mxu0 0.0
        %1209 = vmatprep.subr.mxu0 0.0
        %1210 = vmatpush1.msra.mxu0 0.0
        %1211 = vmatprep.subr.mxu0 0.0
        %1212 = vmatpush1.msra.mxu0 0.0
        %1213 = vmatprep.subr.mxu0 0.0
        %1214 = vmatpush1.msra.mxu0 0.0
        %1215 = vmatprep.mubr.f32.mxu0 0.0
        %1216 = vmatmul.mubr.f32.gmra.mrb[0].mxu0 %v568
        %v1217 = vpop.f32.mrb[0].mxu0
        %v1218 = vadd.f32 %v299, %v1217
        %v1219 = vpop.f32.mrb[0].mxu0
        %v1220 = vadd.f32 %v299, %v1219
        %1221 = vmatprep.mubr.f32.mxu0 0.0
        %1222 = vmatmul.mubr.f32.gmra.mrb[0].mxu0 %v571
        %v1223 = vpop.f32.mrb[0].mxu0
        %v1224 = vadd.f32 %v304, %v1223
        %v1225 = vpop.f32.mrb[0].mxu0
        %v1226 = vadd.f32 %v304, %v1225
        %1227 = vmatprep.mubr.f32.mxu0 0.0
        %1228 = vmatmul.mubr.f32.gmra.mrb[0].mxu0 %v574
        %v1229 = vpop.f32.mrb[0].mxu0
        %v1230 = vadd.f32 %v309, %v1229
        %v1231 = vpop.f32.mrb[0].mxu0
        %v1232 = vadd.f32 %v309, %v1231
        %1233 = vmatprep.mubr.f32.mxu0 0.0
        %1234 = vmatmul.mubr.f32.gmra.mrb[0].mxu0 %v577
        %v1235 = vpop.f32.mrb[0].mxu0
        %v1236 = vadd.f32 %v314, %v1235
        %v1237 = vpop.f32.mrb[0].mxu0
        %v1238 = vadd.f32 %v314, %v1237
        %1239 = vdwg.mxu0
        %v1240 = vmax.f32 %v1218, 0.0
        %v1241 = vmax.f32 %v1220, 0.0
        %v1242 = vmax.f32 %v1224, 0.0
        %v1243 = vmax.f32 %v1226, 0.0
        %v1244 = vmax.f32 %v1230, 0.0
        %v1245 = vmax.f32 %v1232, 0.0
        %v1246 = vmax.f32 %v1236, 0.0
        %v1247 = vmax.f32 %v1238, 0.0
        %1248 = vmatprep.subr.mxu0 %v1241
        %1249 = vmatpush1.msra.mxu0 %v1240
        %1250 = vmatprep.subr.mxu0 %v1243
        %1251 = vmatpush1.msra.mxu0 %v1242
        %1252 = vmatprep.subr.mxu0 %v1245
        %1253 = vmatpush1.msra.mxu0 %v1244
        %1254 = vmatprep.subr.mxu0 %v1247
        %1255 = vmatpush1.msra.mxu0 %v1246
        %1256 = vmatprep.subr.mxu0 0.0
        %1257 = vmatpush1.msra.mxu0 0.0
        %1258 = vmatprep.subr.mxu0 0.0
        %1259 = vmatpush1.msra.mxu0 0.0
        %1260 = vmatprep.subr.mxu0 0.0
        %1261 = vmatpush1.msra.mxu0 0.0
        %1262 = vmatprep.subr.mxu0 0.0
        %1263 = vmatpush1.msra.mxu0 0.0
        %1264 = vmatprep.subr.mxu0 0.0
        %1265 = vmatpush1.msra.mxu0 0.0
        %1266 = vmatprep.subr.mxu0 0.0
        %1267 = vmatpush1.msra.mxu0 0.0
        %1268 = vmatprep.subr.mxu0 0.0
        %1269 = vmatpush1.msra.mxu0 0.0
        %1270 = vmatprep.subr.mxu0 0.0
        %1271 = vmatpush1.msra.mxu0 0.0
        %1272 = vmatprep.subr.mxu0 0.0
        %1273 = vmatpush1.msra.mxu0 0.0
        %1274 = vmatprep.subr.mxu0 0.0
        %1275 = vmatpush1.msra.mxu0 0.0
        %1276 = vmatprep.subr.mxu0 0.0
        %1277 = vmatpush1.msra.mxu0 0.0
        %1278 = vmatprep.subr.mxu0 0.0
        %1279 = vmatpush1.msra.mxu0 0.0
        %1280 = vmatprep.subr.mxu0 0.0
        %1281 = vmatpush1.msra.mxu0 0.0
        %1282 = vmatprep.subr.mxu0 0.0
        %1283 = vmatpush1.msra.mxu0 0.0
        %1284 = vmatprep.subr.mxu0 0.0
        %1285 = vmatpush1.msra.mxu0 0.0
        %1286 = vmatprep.subr.mxu0 0.0
        %1287 = vmatpush1.msra.mxu0 0.0
        %1288 = vmatprep.subr.mxu0 0.0
        %1289 = vmatpush1.msra.mxu0 0.0
        %1290 = vmatprep.subr.mxu0 0.0
        %1291 = vmatpush1.msra.mxu0 0.0
        %1292 = vmatprep.subr.mxu0 0.0
        %1293 = vmatpush1.msra.mxu0 0.0
        %1294 = vmatprep.subr.mxu0 0.0
        %1295 = vmatpush1.msra.mxu0 0.0
        %1296 = vmatprep.subr.mxu0 0.0
        %1297 = vmatpush1.msra.mxu0 0.0
        %1298 = vmatprep.subr.mxu0 0.0
        %1299 = vmatpush1.msra.mxu0 0.0
        %1300 = vmatprep.subr.mxu0 0.0
        %1301 = vmatpush1.msra.mxu0 0.0
        %1302 = vmatprep.subr.mxu0 0.0
        %1303 = vmatpush1.msra.mxu0 0.0
        %1304 = vmatprep.subr.mxu0 0.0
        %1305 = vmatpush1.msra.mxu0 0.0
        %1306 = vmatprep.subr.mxu0 0.0
        %1307 = vmatpush1.msra.mxu0 0.0
        %1308 = vmatprep.subr.mxu0 0.0
        %1309 = vmatpush1.msra.mxu0 0.0
        %1310 = vmatprep.subr.mxu0 0.0
        %1311 = vmatpush1.msra.mxu0 0.0
        %1312 = vmatprep.mubr.f32.mxu0 0.0
        %1313 = vmatmul.mubr.f32.gmra.mrb[0].mxu0 %v360
        %v1314 = vpop.f32.mrb[0].mxu0
        %v1315 = vadd.f32 %v323, %v1314
        %v1316 = vpop.f32.mrb[0].mxu0
        %v1317 = vadd.f32 %v323, %v1316
        %1318 = vmatprep.mubr.f32.mxu0 0.0
        %1319 = vmatmul.mubr.f32.gmra.mrb[0].mxu0 %v363
        %v1320 = vpop.f32.mrb[0].mxu0
        %v1321 = vadd.f32 %v328, %v1320
        %v1322 = vpop.f32.mrb[0].mxu0
        %v1323 = vadd.f32 %v328, %v1322
        %1324 = vmatprep.mubr.f32.mxu0 0.0
        %1325 = vmatmul.mubr.f32.gmra.mrb[0].mxu0 %v366
        %v1326 = vpop.f32.mrb[0].mxu0
        %v1327 = vadd.f32 %v333, %v1326
        %v1328 = vpop.f32.mrb[0].mxu0
        %v1329 = vadd.f32 %v333, %v1328
        %1330 = vmatprep.mubr.f32.mxu0 0.0
        %1331 = vmatmul.mubr.f32.gmra.mrb[0].mxu0 %v369
        %v1332 = vpop.f32.mrb[0].mxu0
        %v1333 = vadd.f32 %v338, %v1332
        %v1334 = vpop.f32.mrb[0].mxu0
        %v1335 = vadd.f32 %v338, %v1334
        %1336 = vdwg.mxu0
        %v1337 = vmax.f32 %v1315, 0.0
        %v1338 = vmax.f32 %v1317, 0.0
        %v1339 = vmax.f32 %v1321, 0.0
        %v1340 = vmax.f32 %v1323, 0.0
        %v1341 = vmax.f32 %v1327, 0.0
        %v1342 = vmax.f32 %v1329, 0.0
        %v1343 = vmax.f32 %v1333, 0.0
        %v1344 = vmax.f32 %v1335, 0.0
        %1345 = vmatprep.subr.mxu0 %v1338
        %1346 = vmatpush1.msra.mxu0 %v1337
        %1347 = vmatprep.subr.mxu0 %v1340
        %1348 = vmatpush1.msra.mxu0 %v1339
        %1349 = vmatprep.subr.mxu0 %v1342
        %1350 = vmatpush1.msra.mxu0 %v1341
        %1351 = vmatprep.subr.mxu0 %v1344
        %1352 = vmatpush1.msra.mxu0 %v1343
        %1353 = vmatprep.subr.mxu0 0.0
        %1354 = vmatpush1.msra.mxu0 0.0
        %1355 = vmatprep.subr.mxu0 0.0
        %1356 = vmatpush1.msra.mxu0 0.0
        %1357 = vmatprep.subr.mxu0 0.0
        %1358 = vmatpush1.msra.mxu0 0.0
        %1359 = vmatprep.subr.mxu0 0.0
        %1360 = vmatpush1.msra.mxu0 0.0
        %1361 = vmatprep.subr.mxu0 0.0
        %1362 = vmatpush1.msra.mxu0 0.0
        %1363 = vmatprep.subr.mxu0 0.0
        %1364 = vmatpush1.msra.mxu0 0.0
        %1365 = vmatprep.subr.mxu0 0.0
        %1366 = vmatpush1.msra.mxu0 0.0
        %1367 = vmatprep.subr.mxu0 0.0
        %1368 = vmatpush1.msra.mxu0 0.0
        %1369 = vmatprep.subr.mxu0 0.0
        %1370 = vmatpush1.msra.mxu0 0.0
        %1371 = vmatprep.subr.mxu0 0.0
        %1372 = vmatpush1.msra.mxu0 0.0
        %1373 = vmatprep.subr.mxu0 0.0
        %1374 = vmatpush1.msra.mxu0 0.0
        %1375 = vmatprep.subr.mxu0 0.0
        %1376 = vmatpush1.msra.mxu0 0.0
        %1377 = vmatprep.subr.mxu0 0.0
        %1378 = vmatpush1.msra.mxu0 0.0
        %1379 = vmatprep.subr.mxu0 0.0
        %1380 = vmatpush1.msra.mxu0 0.0
        %1381 = vmatprep.subr.mxu0 0.0
        %1382 = vmatpush1.msra.mxu0 0.0
        %1383 = vmatprep.subr.mxu0 0.0
        %1384 = vmatpush1.msra.mxu0 0.0
        %1385 = vmatprep.subr.mxu0 0.0
        %1386 = vmatpush1.msra.mxu0 0.0
        %1387 = vmatprep.subr.mxu0 0.0
        %1388 = vmatpush1.msra.mxu0 0.0
        %1389 = vmatprep.subr.mxu0 0.0
        %1390 = vmatpush1.msra.mxu0 0.0
        %1391 = vmatprep.subr.mxu0 0.0
        %1392 = vmatpush1.msra.mxu0 0.0
        %1393 = vmatprep.subr.mxu0 0.0
        %1394 = vmatpush1.msra.mxu0 0.0
        %1395 = vmatprep.subr.mxu0 0.0
        %1396 = vmatpush1.msra.mxu0 0.0
        %1397 = vmatprep.subr.mxu0 0.0
        %1398 = vmatpush1.msra.mxu0 0.0
        %1399 = vmatprep.subr.mxu0 0.0
        %1400 = vmatpush1.msra.mxu0 0.0
        %1401 = vmatprep.subr.mxu0 0.0
        %1402 = vmatpush1.msra.mxu0 0.0
        %1403 = vmatprep.subr.mxu0 0.0
        %1404 = vmatpush1.msra.mxu0 0.0
        %1405 = vmatprep.subr.mxu0 0.0
        %1406 = vmatpush1.msra.mxu0 0.0
        %1407 = vmatprep.subr.mxu0 0.0
        %1408 = vmatpush1.msra.mxu0 0.0
        %1409 = vmatprep.mubr.f32.mxu0 0.0
        %1410 = vmatmul.mubr.f32.gmra.mrb[0].mxu0 %v469
        %v1411 = vpop.f32.mrb[0].mxu0
        %v1412 = vadd.f32 %v345, %v1411
        %v1413 = vpop.f32.mrb[0].mxu0
        %v1414 = vadd.f32 %v345, %v1413
        %1415 = vmatprep.mubr.f32.mxu0 0.0
        %1416 = vmatmul.mubr.f32.gmra.mrb[0].mxu0 %v472
        %v1417 = vpop.f32.mrb[0].mxu0
        %v1418 = vadd.f32 %v350, %v1417
        %v1419 = vpop.f32.mrb[0].mxu0
        %v1420 = vadd.f32 %v350, %v1419
        %1421 = vdwg.mxu0
        %v1422 = vmax.f32 %v1418, -5.0
        %v1423 = vmax.f32 %v1420, -5.0
        %v1424 = vmin.f32 %v1422, 3.0
        %v1425 = vmin.f32 %v1423, 3.0
        %v1426 = vmul.f32 %v1424, 1.442695
        %v1427 = vpow.pop %v1426
        %v1428 = vmul.f32 %v1425, 1.442695
        %v1429 = vpow.pop %v1428
        %v1430 = vmul.f32 %v280, %v1427
        %v1431 = vmul.f32 %v281, %v1429
        %v1432 = vadd.f32 %v1430, %v1412
        %v1433 = vadd.f32 %v1431, %v1414
        %vm1434 = vcmp.eq.s32.totalorder %v353, 3
        %v1435 = vsel %vm1434, %v1432, %v1149
        %v1436 = vsel %vm1434, %v1433, %v1150
        %1437 = vmatprep.subr.mxu0 %v1436
        %1438 = vmatpush1.msra.mxu0 %v1435
        %1439 = vmatprep.subr.mxu0 0.0
        %1440 = vmatpush1.msra.mxu0 0.0
        %1441 = vmatprep.subr.mxu0 0.0
        %1442 = vmatpush1.msra.mxu0 0.0
        %1443 = vmatprep.subr.mxu0 0.0
        %1444 = vmatpush1.msra.mxu0 0.0
        %1445 = vmatprep.subr.mxu0 0.0
        %1446 = vmatpush1.msra.mxu0 0.0
        %1447 = vmatprep.subr.mxu0 0.0
        %1448 = vmatpush1.msra.mxu0 0.0
        %1449 = vmatprep.subr.mxu0 0.0
        %1450 = vmatpush1.msra.mxu0 0.0
        %1451 = vmatprep.subr.mxu0 0.0
        %1452 = vmatpush1.msra.mxu0 0.0
        %1453 = vmatprep.subr.mxu0 0.0
        %1454 = vmatpush1.msra.mxu0 0.0
        %1455 = vmatprep.subr.mxu0 0.0
        %1456 = vmatpush1.msra.mxu0 0.0
        %1457 = vmatprep.subr.mxu0 0.0
        %1458 = vmatpush1.msra.mxu0 0.0
        %1459 = vmatprep.subr.mxu0 0.0
        %1460 = vmatpush1.msra.mxu0 0.0
        %1461 = vmatprep.subr.mxu0 0.0
        %1462 = vmatpush1.msra.mxu0 0.0
        %1463 = vmatprep.subr.mxu0 0.0
        %1464 = vmatpush1.msra.mxu0 0.0
        %1465 = vmatprep.subr.mxu0 0.0
        %1466 = vmatpush1.msra.mxu0 0.0
        %1467 = vmatprep.subr.mxu0 0.0
        %1468 = vmatpush1.msra.mxu0 0.0
        %1469 = vmatprep.subr.mxu0 0.0
        %1470 = vmatpush1.msra.mxu0 0.0
        %1471 = vmatprep.subr.mxu0 0.0
        %1472 = vmatpush1.msra.mxu0 0.0
        %1473 = vmatprep.subr.mxu0 0.0
        %1474 = vmatpush1.msra.mxu0 0.0
        %1475 = vmatprep.subr.mxu0 0.0
        %1476 = vmatpush1.msra.mxu0 0.0
        %1477 = vmatprep.subr.mxu0 0.0
        %1478 = vmatpush1.msra.mxu0 0.0
        %1479 = vmatprep.subr.mxu0 0.0
        %1480 = vmatpush1.msra.mxu0 0.0
        %1481 = vmatprep.subr.mxu0 0.0
        %1482 = vmatpush1.msra.mxu0 0.0
        %1483 = vmatprep.subr.mxu0 0.0
        %1484 = vmatpush1.msra.mxu0 0.0
        %1485 = vmatprep.subr.mxu0 0.0
        %1486 = vmatpush1.msra.mxu0 0.0
        %1487 = vmatprep.subr.mxu0 0.0
        %1488 = vmatpush1.msra.mxu0 0.0
        %1489 = vmatprep.subr.mxu0 0.0
        %1490 = vmatpush1.msra.mxu0 0.0
        %1491 = vmatprep.subr.mxu0 0.0
        %1492 = vmatpush1.msra.mxu0 0.0
        %1493 = vmatprep.subr.mxu0 0.0
        %1494 = vmatpush1.msra.mxu0 0.0
        %1495 = vmatprep.subr.mxu0 0.0
        %1496 = vmatpush1.msra.mxu0 0.0
        %1497 = vmatprep.subr.mxu0 0.0
        %1498 = vmatpush1.msra.mxu0 0.0
        %1499 = vmatprep.subr.mxu0 0.0
        %1500 = vmatpush1.msra.mxu0 0.0
        %1501 = vmatprep.mubr.f32.mxu0 0.0
        %1502 = vmatmul.mubr.f32.gmra.mrb[0].mxu0 %v568
        %v1503 = vpop.f32.mrb[0].mxu0
        %v1504 = vadd.f32 %v299, %v1503
        %v1505 = vpop.f32.mrb[0].mxu0
        %v1506 = vadd.f32 %v299, %v1505
        %1507 = vmatprep.mubr.f32.mxu0 0.0
        %1508 = vmatmul.mubr.f32.gmra.mrb[0].mxu0 %v571
        %v1509 = vpop.f32.mrb[0].mxu0
        %v1510 = vadd.f32 %v304, %v1509
        %v1511 = vpop.f32.mrb[0].mxu0
        %v1512 = vadd.f32 %v304, %v1511
        %1513 = vmatprep.mubr.f32.mxu0 0.0
        %1514 = vmatmul.mubr.f32.gmra.mrb[0].mxu0 %v574
        %v1515 = vpop.f32.mrb[0].mxu0
        %v1516 = vadd.f32 %v309, %v1515
        %v1517 = vpop.f32.mrb[0].mxu0
        %v1518 = vadd.f32 %v309, %v1517
        %1519 = vmatprep.mubr.f32.mxu0 0.0
        %1520 = vmatmul.mubr.f32.gmra.mrb[0].mxu0 %v577
        %v1521 = vpop.f32.mrb[0].mxu0
        %v1522 = vadd.f32 %v314, %v1521
        %v1523 = vpop.f32.mrb[0].mxu0
        %v1524 = vadd.f32 %v314, %v1523
        %1525 = vdwg.mxu0
        %v1526 = vmax.f32 %v1504, 0.0
        %v1527 = vmax.f32 %v1506, 0.0
        %v1528 = vmax.f32 %v1510, 0.0
        %v1529 = vmax.f32 %v1512, 0.0
        %v1530 = vmax.f32 %v1516, 0.0
        %v1531 = vmax.f32 %v1518, 0.0
        %v1532 = vmax.f32 %v1522, 0.0
        %v1533 = vmax.f32 %v1524, 0.0
        %1534 = vmatprep.subr.mxu0 %v1527
        %1535 = vmatpush1.msra.mxu0 %v1526
        %1536 = vmatprep.subr.mxu0 %v1529
        %1537 = vmatpush1.msra.mxu0 %v1528
        %1538 = vmatprep.subr.mxu0 %v1531
        %1539 = vmatpush1.msra.mxu0 %v1530
        %1540 = vmatprep.subr.mxu0 %v1533
        %1541 = vmatpush1.msra.mxu0 %v1532
        %1542 = vmatprep.subr.mxu0 0.0
        %1543 = vmatpush1.msra.mxu0 0.0
        %1544 = vmatprep.subr.mxu0 0.0
        %1545 = vmatpush1.msra.mxu0 0.0
        %1546 = vmatprep.subr.mxu0 0.0
        %1547 = vmatpush1.msra.mxu0 0.0
        %1548 = vmatprep.subr.mxu0 0.0
        %1549 = vmatpush1.msra.mxu0 0.0
        %1550 = vmatprep.subr.mxu0 0.0
        %1551 = vmatpush1.msra.mxu0 0.0
        %1552 = vmatprep.subr.mxu0 0.0
        %1553 = vmatpush1.msra.mxu0 0.0
        %1554 = vmatprep.subr.mxu0 0.0
        %1555 = vmatpush1.msra.mxu0 0.0
        %1556 = vmatprep.subr.mxu0 0.0
        %1557 = vmatpush1.msra.mxu0 0.0
        %1558 = vmatprep.subr.mxu0 0.0
        %1559 = vmatpush1.msra.mxu0 0.0
        %1560 = vmatprep.subr.mxu0 0.0
        %1561 = vmatpush1.msra.mxu0 0.0
        %1562 = vmatprep.subr.mxu0 0.0
        %1563 = vmatpush1.msra.mxu0 0.0
        %1564 = vmatprep.subr.mxu0 0.0
        %1565 = vmatpush1.msra.mxu0 0.0
        %1566 = vmatprep.subr.mxu0 0.0
        %1567 = vmatpush1.msra.mxu0 0.0
        %1568 = vmatprep.subr.mxu0 0.0
        %1569 = vmatpush1.msra.mxu0 0.0
        %1570 = vmatprep.subr.mxu0 0.0
        %1571 = vmatpush1.msra.mxu0 0.0
        %1572 = vmatprep.subr.mxu0 0.0
        %1573 = vmatpush1.msra.mxu0 0.0
        %1574 = vmatprep.subr.mxu0 0.0
        %1575 = vmatpush1.msra.mxu0 0.0
        %1576 = vmatprep.subr.mxu0 0.0
        %1577 = vmatpush1.msra.mxu0 0.0
        %1578 = vmatprep.subr.mxu0 0.0
        %1579 = vmatpush1.msra.mxu0 0.0
        %1580 = vmatprep.subr.mxu0 0.0
        %1581 = vmatpush1.msra.mxu0 0.0
        %1582 = vmatprep.subr.mxu0 0.0
        %1583 = vmatpush1.msra.mxu0 0.0
        %1584 = vmatprep.subr.mxu0 0.0
        %1585 = vmatpush1.msra.mxu0 0.0
        %1586 = vmatprep.subr.mxu0 0.0
        %1587 = vmatpush1.msra.mxu0 0.0
        %1588 = vmatprep.subr.mxu0 0.0
        %1589 = vmatpush1.msra.mxu0 0.0
        %1590 = vmatprep.subr.mxu0 0.0
        %1591 = vmatpush1.msra.mxu0 0.0
        %1592 = vmatprep.subr.mxu0 0.0
        %1593 = vmatpush1.msra.mxu0 0.0
        %1594 = vmatprep.subr.mxu0 0.0
        %1595 = vmatpush1.msra.mxu0 0.0
        %1596 = vmatprep.subr.mxu0 0.0
        %1597 = vmatpush1.msra.mxu0 0.0
        %1598 = vmatprep.mubr.f32.mxu0 0.0
        %1599 = vmatmul.mubr.f32.gmra.mrb[0].mxu0 %v360
        %v1600 = vpop.f32.mrb[0].mxu0
        %v1601 = vadd.f32 %v323, %v1600
        %v1602 = vpop.f32.mrb[0].mxu0
        %v1603 = vadd.f32 %v323, %v1602
        %1604 = vmatprep.mubr.f32.mxu0 0.0
        %1605 = vmatmul.mubr.f32.gmra.mrb[0].mxu0 %v363
        %v1606 = vpop.f32.mrb[0].mxu0
        %v1607 = vadd.f32 %v328, %v1606
        %v1608 = vpop.f32.mrb[0].mxu0
        %v1609 = vadd.f32 %v328, %v1608
        %1610 = vmatprep.mubr.f32.mxu0 0.0
        %1611 = vmatmul.mubr.f32.gmra.mrb[0].mxu0 %v366
        %v1612 = vpop.f32.mrb[0].mxu0
        %v1613 = vadd.f32 %v333, %v1612
        %v1614 = vpop.f32.mrb[0].mxu0
        %v1615 = vadd.f32 %v333, %v1614
        %1616 = vmatprep.mubr.f32.mxu0 0.0
        %1617 = vmatmul.mubr.f32.gmra.mrb[0].mxu0 %v369
        %v1618 = vpop.f32.mrb[0].mxu0
        %v1619 = vadd.f32 %v338, %v1618
        %v1620 = vpop.f32.mrb[0].mxu0
        %v1621 = vadd.f32 %v338, %v1620
        %1622 = vdwg.mxu0
        %v1623 = vmax.f32 %v1601, 0.0
        %v1624 = vmax.f32 %v1603, 0.0
        %v1625 = vmax.f32 %v1607, 0.0
        %v1626 = vmax.f32 %v1609, 0.0
        %v1627 = vmax.f32 %v1613, 0.0
        %v1628 = vmax.f32 %v1615, 0.0
        %v1629 = vmax.f32 %v1619, 0.0
        %v1630 = vmax.f32 %v1621, 0.0
        %1631 = vmatprep.subr.mxu0 %v1624
        %1632 = vmatpush1.msra.mxu0 %v1623
        %1633 = vmatprep.subr.mxu0 %v1626
        %1634 = vmatpush1.msra.mxu0 %v1625
        %1635 = vmatprep.subr.mxu0 %v1628
        %1636 = vmatpush1.msra.mxu0 %v1627
        %1637 = vmatprep.subr.mxu0 %v1630
        %1638 = vmatpush1.msra.mxu0 %v1629
        %1639 = vmatprep.subr.mxu0 0.0
        %1640 = vmatpush1.msra.mxu0 0.0
        %1641 = vmatprep.subr.mxu0 0.0
        %1642 = vmatpush1.msra.mxu0 0.0
        %1643 = vmatprep.subr.mxu0 0.0
        %1644 = vmatpush1.msra.mxu0 0.0
        %1645 = vmatprep.subr.mxu0 0.0
        %1646 = vmatpush1.msra.mxu0 0.0
        %1647 = vmatprep.subr.mxu0 0.0
        %1648 = vmatpush1.msra.mxu0 0.0
        %1649 = vmatprep.subr.mxu0 0.0
        %1650 = vmatpush1.msra.mxu0 0.0
        %1651 = vmatprep.subr.mxu0 0.0
        %1652 = vmatpush1.msra.mxu0 0.0
        %1653 = vmatprep.subr.mxu0 0.0
        %1654 = vmatpush1.msra.mxu0 0.0
        %1655 = vmatprep.subr.mxu0 0.0
        %1656 = vmatpush1.msra.mxu0 0.0
        %1657 = vmatprep.subr.mxu0 0.0
        %1658 = vmatpush1.msra.mxu0 0.0
        %1659 = vmatprep.subr.mxu0 0.0
        %1660 = vmatpush1.msra.mxu0 0.0
        %1661 = vmatprep.subr.mxu0 0.0
        %1662 = vmatpush1.msra.mxu0 0.0
        %1663 = vmatprep.subr.mxu0 0.0
        %1664 = vmatpush1.msra.mxu0 0.0
        %1665 = vmatprep.subr.mxu0 0.0
        %1666 = vmatpush1.msra.mxu0 0.0
        %1667 = vmatprep.subr.mxu0 0.0
        %1668 = vmatpush1.msra.mxu0 0.0
        %1669 = vmatprep.subr.mxu0 0.0
        %1670 = vmatpush1.msra.mxu0 0.0
        %1671 = vmatprep.subr.mxu0 0.0
        %1672 = vmatpush1.msra.mxu0 0.0
        %1673 = vmatprep.subr.mxu0 0.0
        %1674 = vmatpush1.msra.mxu0 0.0
        %1675 = vmatprep.subr.mxu0 0.0
        %1676 = vmatpush1.msra.mxu0 0.0
        %1677 = vmatprep.subr.mxu0 0.0
        %1678 = vmatpush1.msra.mxu0 0.0
        %1679 = vmatprep.subr.mxu0 0.0
        %1680 = vmatpush1.msra.mxu0 0.0
        %1681 = vmatprep.subr.mxu0 0.0
        %1682 = vmatpush1.msra.mxu0 0.0
        %1683 = vmatprep.subr.mxu0 0.0
        %1684 = vmatpush1.msra.mxu0 0.0
        %1685 = vmatprep.subr.mxu0 0.0
        %1686 = vmatpush1.msra.mxu0 0.0
        %1687 = vmatprep.subr.mxu0 0.0
        %1688 = vmatpush1.msra.mxu0 0.0
        %1689 = vmatprep.subr.mxu0 0.0
        %1690 = vmatpush1.msra.mxu0 0.0
        %1691 = vmatprep.subr.mxu0 0.0
        %1692 = vmatpush1.msra.mxu0 0.0
        %1693 = vmatprep.subr.mxu0 0.0
        %1694 = vmatpush1.msra.mxu0 0.0
        %1695 = vmatprep.mubr.f32.mxu0 0.0
        %1696 = vmatmul.mubr.f32.gmra.mrb[0].mxu0 %v469
        %v1697 = vpop.f32.mrb[0].mxu0
        %v1698 = vadd.f32 %v345, %v1697
        %v1699 = vpop.f32.mrb[0].mxu0
        %v1700 = vadd.f32 %v345, %v1699
        %1701 = vmatprep.mubr.f32.mxu0 0.0
        %1702 = vmatmul.mubr.f32.gmra.mrb[0].mxu0 %v472
        %v1703 = vpop.f32.mrb[0].mxu0
        %v1704 = vadd.f32 %v350, %v1703
        %v1705 = vpop.f32.mrb[0].mxu0
        %v1706 = vadd.f32 %v350, %v1705
        %1707 = vdwg.mxu0
        %v1708 = vmax.f32 %v1704, -5.0
        %v1709 = vmax.f32 %v1706, -5.0
        %v1710 = vmin.f32 %v1708, 3.0
        %v1711 = vmin.f32 %v1709, 3.0
        %v1712 = vmul.f32 %v1710, 1.442695
        %v1713 = vpow.pop %v1712
        %v1714 = vmul.f32 %v1711, 1.442695
        %v1715 = vpow.pop %v1714
        %v1716 = vmul.f32 %v280, %v1713
        %v1717 = vmul.f32 %v281, %v1715
        %v1718 = vadd.f32 %v1716, %v1698
        %v1719 = vadd.f32 %v1717, %v1700
        %vm1720 = vcmp.eq.s32.totalorder %v353, 4
        %v1721 = vsel %vm1720, %v1718, %v1435
        %v1722 = vsel %vm1720, %v1719, %v1436
        %1723 = vmatprep.subr.mxu0 %v1722
        %1724 = vmatpush1.msra.mxu0 %v1721
        %1725 = vmatprep.subr.mxu0 0.0
        %1726 = vmatpush1.msra.mxu0 0.0
        %1727 = vmatprep.subr.mxu0 0.0
        %1728 = vmatpush1.msra.mxu0 0.0
        %1729 = vmatprep.subr.mxu0 0.0
        %1730 = vmatpush1.msra.mxu0 0.0
        %1731 = vmatprep.subr.mxu0 0.0
        %1732 = vmatpush1.msra.mxu0 0.0
        %1733 = vmatprep.subr.mxu0 0.0
        %1734 = vmatpush1.msra.mxu0 0.0
        %1735 = vmatprep.subr.mxu0 0.0
        %1736 = vmatpush1.msra.mxu0 0.0
        %1737 = vmatprep.subr.mxu0 0.0
        %1738 = vmatpush1.msra.mxu0 0.0
        %1739 = vmatprep.subr.mxu0 0.0
        %1740 = vmatpush1.msra.mxu0 0.0
        %1741 = vmatprep.subr.mxu0 0.0
        %1742 = vmatpush1.msra.mxu0 0.0
        %1743 = vmatprep.subr.mxu0 0.0
        %1744 = vmatpush1.msra.mxu0 0.0
        %1745 = vmatprep.subr.mxu0 0.0
        %1746 = vmatpush1.msra.mxu0 0.0
        %1747 = vmatprep.subr.mxu0 0.0
        %1748 = vmatpush1.msra.mxu0 0.0
        %1749 = vmatprep.subr.mxu0 0.0
        %1750 = vmatpush1.msra.mxu0 0.0
        %1751 = vmatprep.subr.mxu0 0.0
        %1752 = vmatpush1.msra.mxu0 0.0
        %1753 = vmatprep.subr.mxu0 0.0
        %1754 = vmatpush1.msra.mxu0 0.0
        %1755 = vmatprep.subr.mxu0 0.0
        %1756 = vmatpush1.msra.mxu0 0.0
        %1757 = vmatprep.subr.mxu0 0.0
        %1758 = vmatpush1.msra.mxu0 0.0
        %1759 = vmatprep.subr.mxu0 0.0
        %1760 = vmatpush1.msra.mxu0 0.0
        %1761 = vmatprep.subr.mxu0 0.0
        %1762 = vmatpush1.msra.mxu0 0.0
        %1763 = vmatprep.subr.mxu0 0.0
        %1764 = vmatpush1.msra.mxu0 0.0
        %1765 = vmatprep.subr.mxu0 0.0
        %1766 = vmatpush1.msra.mxu0 0.0
        %1767 = vmatprep.subr.mxu0 0.0
        %1768 = vmatpush1.msra.mxu0 0.0
        %1769 = vmatprep.subr.mxu0 0.0
        %1770 = vmatpush1.msra.mxu0 0.0
        %1771 = vmatprep.subr.mxu0 0.0
        %1772 = vmatpush1.msra.mxu0 0.0
        %1773 = vmatprep.subr.mxu0 0.0
        %1774 = vmatpush1.msra.mxu0 0.0
        %1775 = vmatprep.subr.mxu0 0.0
        %1776 = vmatpush1.msra.mxu0 0.0
        %1777 = vmatprep.subr.mxu0 0.0
        %1778 = vmatpush1.msra.mxu0 0.0
        %1779 = vmatprep.subr.mxu0 0.0
        %1780 = vmatpush1.msra.mxu0 0.0
        %1781 = vmatprep.subr.mxu0 0.0
        %1782 = vmatpush1.msra.mxu0 0.0
        %1783 = vmatprep.subr.mxu0 0.0
        %1784 = vmatpush1.msra.mxu0 0.0
        %1785 = vmatprep.subr.mxu0 0.0
        %1786 = vmatpush1.msra.mxu0 0.0
        %1787 = vmatprep.mubr.f32.mxu0 0.0
        %1788 = vmatmul.mubr.f32.gmra.mrb[0].mxu0 %v568
        %v1789 = vpop.f32.mrb[0].mxu0
        %v1790 = vadd.f32 %v299, %v1789
        %v1791 = vpop.f32.mrb[0].mxu0
        %v1792 = vadd.f32 %v299, %v1791
        %1793 = vmatprep.mubr.f32.mxu0 0.0
        %1794 = vmatmul.mubr.f32.gmra.mrb[0].mxu0 %v571
        %v1795 = vpop.f32.mrb[0].mxu0
        %v1796 = vadd.f32 %v304, %v1795
        %v1797 = vpop.f32.mrb[0].mxu0
        %v1798 = vadd.f32 %v304, %v1797
        %1799 = vmatprep.mubr.f32.mxu0 0.0
        %1800 = vmatmul.mubr.f32.gmra.mrb[0].mxu0 %v574
        %v1801 = vpop.f32.mrb[0].mxu0
        %v1802 = vadd.f32 %v309, %v1801
        %v1803 = vpop.f32.mrb[0].mxu0
        %v1804 = vadd.f32 %v309, %v1803
        %1805 = vmatprep.mubr.f32.mxu0 0.0
        %1806 = vmatmul.mubr.f32.gmra.mrb[0].mxu0 %v577
        %v1807 = vpop.f32.mrb[0].mxu0
        %v1808 = vadd.f32 %v314, %v1807
        %v1809 = vpop.f32.mrb[0].mxu0
        %v1810 = vadd.f32 %v314, %v1809
        %1811 = vdwg.mxu0
        %v1812 = vmax.f32 %v1790, 0.0
        %v1813 = vmax.f32 %v1792, 0.0
        %v1814 = vmax.f32 %v1796, 0.0
        %v1815 = vmax.f32 %v1798, 0.0
        %v1816 = vmax.f32 %v1802, 0.0
        %v1817 = vmax.f32 %v1804, 0.0
        %v1818 = vmax.f32 %v1808, 0.0
        %v1819 = vmax.f32 %v1810, 0.0
        %1820 = vmatprep.subr.mxu0 %v1813
        %1821 = vmatpush1.msra.mxu0 %v1812
        %1822 = vmatprep.subr.mxu0 %v1815
        %1823 = vmatpush1.msra.mxu0 %v1814
        %1824 = vmatprep.subr.mxu0 %v1817
        %1825 = vmatpush1.msra.mxu0 %v1816
        %1826 = vmatprep.subr.mxu0 %v1819
        %1827 = vmatpush1.msra.mxu0 %v1818
        %1828 = vmatprep.subr.mxu0 0.0
        %1829 = vmatpush1.msra.mxu0 0.0
        %1830 = vmatprep.subr.mxu0 0.0
        %1831 = vmatpush1.msra.mxu0 0.0
        %1832 = vmatprep.subr.mxu0 0.0
        %1833 = vmatpush1.msra.mxu0 0.0
        %1834 = vmatprep.subr.mxu0 0.0
        %1835 = vmatpush1.msra.mxu0 0.0
        %1836 = vmatprep.subr.mxu0 0.0
        %1837 = vmatpush1.msra.mxu0 0.0
        %1838 = vmatprep.subr.mxu0 0.0
        %1839 = vmatpush1.msra.mxu0 0.0
        %1840 = vmatprep.subr.mxu0 0.0
        %1841 = vmatpush1.msra.mxu0 0.0
        %1842 = vmatprep.subr.mxu0 0.0
        %1843 = vmatpush1.msra.mxu0 0.0
        %1844 = vmatprep.subr.mxu0 0.0
        %1845 = vmatpush1.msra.mxu0 0.0
        %1846 = vmatprep.subr.mxu0 0.0
        %1847 = vmatpush1.msra.mxu0 0.0
        %1848 = vmatprep.subr.mxu0 0.0
        %1849 = vmatpush1.msra.mxu0 0.0
        %1850 = vmatprep.subr.mxu0 0.0
        %1851 = vmatpush1.msra.mxu0 0.0
        %1852 = vmatprep.subr.mxu0 0.0
        %1853 = vmatpush1.msra.mxu0 0.0
        %1854 = vmatprep.subr.mxu0 0.0
        %1855 = vmatpush1.msra.mxu0 0.0
        %1856 = vmatprep.subr.mxu0 0.0
        %1857 = vmatpush1.msra.mxu0 0.0
        %1858 = vmatprep.subr.mxu0 0.0
        %1859 = vmatpush1.msra.mxu0 0.0
        %1860 = vmatprep.subr.mxu0 0.0
        %1861 = vmatpush1.msra.mxu0 0.0
        %1862 = vmatprep.subr.mxu0 0.0
        %1863 = vmatpush1.msra.mxu0 0.0
        %1864 = vmatprep.subr.mxu0 0.0
        %1865 = vmatpush1.msra.mxu0 0.0
        %1866 = vmatprep.subr.mxu0 0.0
        %1867 = vmatpush1.msra.mxu0 0.0
        %1868 = vmatprep.subr.mxu0 0.0
        %1869 = vmatpush1.msra.mxu0 0.0
        %1870 = vmatprep.subr.mxu0 0.0
        %1871 = vmatpush1.msra.mxu0 0.0
        %1872 = vmatprep.subr.mxu0 0.0
        %1873 = vmatpush1.msra.mxu0 0.0
        %1874 = vmatprep.subr.mxu0 0.0
        %1875 = vmatpush1.msra.mxu0 0.0
        %1876 = vmatprep.subr.mxu0 0.0
        %1877 = vmatpush1.msra.mxu0 0.0
        %1878 = vmatprep.subr.mxu0 0.0
        %1879 = vmatpush1.msra.mxu0 0.0
        %1880 = vmatprep.subr.mxu0 0.0
        %1881 = vmatpush1.msra.mxu0 0.0
        %1882 = vmatprep.subr.mxu0 0.0
        %1883 = vmatpush1.msra.mxu0 0.0
        %1884 = vmatprep.mubr.f32.mxu0 0.0
        %1885 = vmatmul.mubr.f32.gmra.mrb[0].mxu0 %v360
        %v1886 = vpop.f32.mrb[0].mxu0
        %v1887 = vadd.f32 %v323, %v1886
        %v1888 = vpop.f32.mrb[0].mxu0
        %v1889 = vadd.f32 %v323, %v1888
        %1890 = vmatprep.mubr.f32.mxu0 0.0
        %1891 = vmatmul.mubr.f32.gmra.mrb[0].mxu0 %v363
        %v1892 = vpop.f32.mrb[0].mxu0
        %v1893 = vadd.f32 %v328, %v1892
        %v1894 = vpop.f32.mrb[0].mxu0
        %v1895 = vadd.f32 %v328, %v1894
        %1896 = vmatprep.mubr.f32.mxu0 0.0
        %1897 = vmatmul.mubr.f32.gmra.mrb[0].mxu0 %v366
        %v1898 = vpop.f32.mrb[0].mxu0
        %v1899 = vadd.f32 %v333, %v1898
        %v1900 = vpop.f32.mrb[0].mxu0
        %v1901 = vadd.f32 %v333, %v1900
        %1902 = vmatprep.mubr.f32.mxu0 0.0
        %1903 = vmatmul.mubr.f32.gmra.mrb[0].mxu0 %v369
        %v1904 = vpop.f32.mrb[0].mxu0
        %v1905 = vadd.f32 %v338, %v1904
        %v1906 = vpop.f32.mrb[0].mxu0
        %v1907 = vadd.f32 %v338, %v1906
        %1908 = vdwg.mxu0
        %v1909 = vmax.f32 %v1887, 0.0
        %v1910 = vmax.f32 %v1889, 0.0
        %v1911 = vmax.f32 %v1893, 0.0
        %v1912 = vmax.f32 %v1895, 0.0
        %v1913 = vmax.f32 %v1899, 0.0
        %v1914 = vmax.f32 %v1901, 0.0
        %v1915 = vmax.f32 %v1905, 0.0
        %v1916 = vmax.f32 %v1907, 0.0
        %1917 = vmatprep.subr.mxu0 %v1910
        %1918 = vmatpush1.msra.mxu0 %v1909
        %1919 = vmatprep.subr.mxu0 %v1912
        %1920 = vmatpush1.msra.mxu0 %v1911
        %1921 = vmatprep.subr.mxu0 %v1914
        %1922 = vmatpush1.msra.mxu0 %v1913
        %1923 = vmatprep.subr.mxu0 %v1916
        %1924 = vmatpush1.msra.mxu0 %v1915
        %1925 = vmatprep.subr.mxu0 0.0
        %1926 = vmatpush1.msra.mxu0 0.0
        %1927 = vmatprep.subr.mxu0 0.0
        %1928 = vmatpush1.msra.mxu0 0.0
        %1929 = vmatprep.subr.mxu0 0.0
        %1930 = vmatpush1.msra.mxu0 0.0
        %1931 = vmatprep.subr.mxu0 0.0
        %1932 = vmatpush1.msra.mxu0 0.0
        %1933 = vmatprep.subr.mxu0 0.0
        %1934 = vmatpush1.msra.mxu0 0.0
        %1935 = vmatprep.subr.mxu0 0.0
        %1936 = vmatpush1.msra.mxu0 0.0
        %1937 = vmatprep.subr.mxu0 0.0
        %1938 = vmatpush1.msra.mxu0 0.0
        %1939 = vmatprep.subr.mxu0 0.0
        %1940 = vmatpush1.msra.mxu0 0.0
        %1941 = vmatprep.subr.mxu0 0.0
        %1942 = vmatpush1.msra.mxu0 0.0
        %1943 = vmatprep.subr.mxu0 0.0
        %1944 = vmatpush1.msra.mxu0 0.0
        %1945 = vmatprep.subr.mxu0 0.0
        %1946 = vmatpush1.msra.mxu0 0.0
        %1947 = vmatprep.subr.mxu0 0.0
        %1948 = vmatpush1.msra.mxu0 0.0
        %1949 = vmatprep.subr.mxu0 0.0
        %1950 = vmatpush1.msra.mxu0 0.0
        %1951 = vmatprep.subr.mxu0 0.0
        %1952 = vmatpush1.msra.mxu0 0.0
        %1953 = vmatprep.subr.mxu0 0.0
        %1954 = vmatpush1.msra.mxu0 0.0
        %1955 = vmatprep.subr.mxu0 0.0
        %1956 = vmatpush1.msra.mxu0 0.0
        %1957 = vmatprep.subr.mxu0 0.0
        %1958 = vmatpush1.msra.mxu0 0.0
        %1959 = vmatprep.subr.mxu0 0.0
        %1960 = vmatpush1.msra.mxu0 0.0
        %1961 = vmatprep.subr.mxu0 0.0
        %1962 = vmatpush1.msra.mxu0 0.0
        %1963 = vmatprep.subr.mxu0 0.0
        %1964 = vmatpush1.msra.mxu0 0.0
        %1965 = vmatprep.subr.mxu0 0.0
        %1966 = vmatpush1.msra.mxu0 0.0
        %1967 = vmatprep.subr.mxu0 0.0
        %1968 = vmatpush1.msra.mxu0 0.0
        %1969 = vmatprep.subr.mxu0 0.0
        %1970 = vmatpush1.msra.mxu0 0.0
        %1971 = vmatprep.subr.mxu0 0.0
        %1972 = vmatpush1.msra.mxu0 0.0
        %1973 = vmatprep.subr.mxu0 0.0
        %1974 = vmatpush1.msra.mxu0 0.0
        %1975 = vmatprep.subr.mxu0 0.0
        %1976 = vmatpush1.msra.mxu0 0.0
        %1977 = vmatprep.subr.mxu0 0.0
        %1978 = vmatpush1.msra.mxu0 0.0
        %1979 = vmatprep.subr.mxu0 0.0
        %1980 = vmatpush1.msra.mxu0 0.0
        %1981 = vmatprep.mubr.f32.mxu0 0.0
        %1982 = vmatmul.mubr.f32.gmra.mrb[0].mxu0 %v469
        %v1983 = vpop.f32.mrb[0].mxu0
        %v1984 = vadd.f32 %v345, %v1983
        %v1985 = vpop.f32.mrb[0].mxu0
        %v1986 = vadd.f32 %v345, %v1985
        %1987 = vmatprep.mubr.f32.mxu0 0.0
        %1988 = vmatmul.mubr.f32.gmra.mrb[0].mxu0 %v472
        %v1989 = vpop.f32.mrb[0].mxu0
        %v1990 = vadd.f32 %v350, %v1989
        %v1991 = vpop.f32.mrb[0].mxu0
        %v1992 = vadd.f32 %v350, %v1991
        %1993 = vdwg.mxu0
        %v1994 = vmax.f32 %v1990, -5.0
        %v1995 = vmax.f32 %v1992, -5.0
        %v1996 = vmin.f32 %v1994, 3.0
        %v1997 = vmin.f32 %v1995, 3.0
        %v1998 = vmul.f32 %v1996, 1.442695
        %v1999 = vpow.pop %v1998
        %v2000 = vmul.f32 %v1997, 1.442695
        %v2001 = vpow.pop %v2000
        %v2002 = vmul.f32 %v280, %v1999
        %v2003 = vmul.f32 %v281, %v2001
        %v2004 = vadd.f32 %v2002, %v1984
        %v2005 = vadd.f32 %v2003, %v1986
        %vm2006 = vcmp.eq.s32.totalorder %v353, 5
        %v2007 = vsel %vm2006, %v2004, %v1721
        %v2008 = vsel %vm2006, %v2005, %v1722
        %2009 = vmatprep.subr.mxu0 %v2008
        %2010 = vmatpush1.msra.mxu0 %v2007
        %2011 = vmatprep.subr.mxu0 0.0
        %2012 = vmatpush1.msra.mxu0 0.0
        %2013 = vmatprep.subr.mxu0 0.0
        %2014 = vmatpush1.msra.mxu0 0.0
        %2015 = vmatprep.subr.mxu0 0.0
        %2016 = vmatpush1.msra.mxu0 0.0
        %2017 = vmatprep.subr.mxu0 0.0
        %2018 = vmatpush1.msra.mxu0 0.0
        %2019 = vmatprep.subr.mxu0 0.0
        %2020 = vmatpush1.msra.mxu0 0.0
        %2021 = vmatprep.subr.mxu0 0.0
        %2022 = vmatpush1.msra.mxu0 0.0
        %2023 = vmatprep.subr.mxu0 0.0
        %2024 = vmatpush1.msra.mxu0 0.0
        %2025 = vmatprep.subr.mxu0 0.0
        %2026 = vmatpush1.msra.mxu0 0.0
        %2027 = vmatprep.subr.mxu0 0.0
        %2028 = vmatpush1.msra.mxu0 0.0
        %2029 = vmatprep.subr.mxu0 0.0
        %2030 = vmatpush1.msra.mxu0 0.0
        %2031 = vmatprep.subr.mxu0 0.0
        %2032 = vmatpush1.msra.mxu0 0.0
        %2033 = vmatprep.subr.mxu0 0.0
        %2034 = vmatpush1.msra.mxu0 0.0
        %2035 = vmatprep.subr.mxu0 0.0
        %2036 = vmatpush1.msra.mxu0 0.0
        %2037 = vmatprep.subr.mxu0 0.0
        %2038 = vmatpush1.msra.mxu0 0.0
        %2039 = vmatprep.subr.mxu0 0.0
        %2040 = vmatpush1.msra.mxu0 0.0
        %2041 = vmatprep.subr.mxu0 0.0
        %2042 = vmatpush1.msra.mxu0 0.0
        %2043 = vmatprep.subr.mxu0 0.0
        %2044 = vmatpush1.msra.mxu0 0.0
        %2045 = vmatprep.subr.mxu0 0.0
        %2046 = vmatpush1.msra.mxu0 0.0
        %2047 = vmatprep.subr.mxu0 0.0
        %2048 = vmatpush1.msra.mxu0 0.0
        %2049 = vmatprep.subr.mxu0 0.0
        %2050 = vmatpush1.msra.mxu0 0.0
        %2051 = vmatprep.subr.mxu0 0.0
        %2052 = vmatpush1.msra.mxu0 0.0
        %2053 = vmatprep.subr.mxu0 0.0
        %2054 = vmatpush1.msra.mxu0 0.0
        %2055 = vmatprep.subr.mxu0 0.0
        %2056 = vmatpush1.msra.mxu0 0.0
        %2057 = vmatprep.subr.mxu0 0.0
        %2058 = vmatpush1.msra.mxu0 0.0
        %2059 = vmatprep.subr.mxu0 0.0
        %2060 = vmatpush1.msra.mxu0 0.0
        %2061 = vmatprep.subr.mxu0 0.0
        %2062 = vmatpush1.msra.mxu0 0.0
        %2063 = vmatprep.subr.mxu0 0.0
        %2064 = vmatpush1.msra.mxu0 0.0
        %2065 = vmatprep.subr.mxu0 0.0
        %2066 = vmatpush1.msra.mxu0 0.0
        %2067 = vmatprep.subr.mxu0 0.0
        %2068 = vmatpush1.msra.mxu0 0.0
        %2069 = vmatprep.subr.mxu0 0.0
        %2070 = vmatpush1.msra.mxu0 0.0
        %2071 = vmatprep.subr.mxu0 0.0
        %2072 = vmatpush1.msra.mxu0 0.0
        %2073 = vmatprep.mubr.f32.mxu0 0.0
        %2074 = vmatmul.mubr.f32.gmra.mrb[0].mxu0 %v568
        %v2075 = vpop.f32.mrb[0].mxu0
        %v2076 = vadd.f32 %v299, %v2075
        %v2077 = vpop.f32.mrb[0].mxu0
        %v2078 = vadd.f32 %v299, %v2077
        %2079 = vmatprep.mubr.f32.mxu0 0.0
        %2080 = vmatmul.mubr.f32.gmra.mrb[0].mxu0 %v571
        %v2081 = vpop.f32.mrb[0].mxu0
        %v2082 = vadd.f32 %v304, %v2081
        %v2083 = vpop.f32.mrb[0].mxu0
        %v2084 = vadd.f32 %v304, %v2083
        %2085 = vmatprep.mubr.f32.mxu0 0.0
        %2086 = vmatmul.mubr.f32.gmra.mrb[0].mxu0 %v574
        %v2087 = vpop.f32.mrb[0].mxu0
        %v2088 = vadd.f32 %v309, %v2087
        %v2089 = vpop.f32.mrb[0].mxu0
        %v2090 = vadd.f32 %v309, %v2089
        %2091 = vmatprep.mubr.f32.mxu0 0.0
        %2092 = vmatmul.mubr.f32.gmra.mrb[0].mxu0 %v577
        %v2093 = vpop.f32.mrb[0].mxu0
        %v2094 = vadd.f32 %v314, %v2093
        %v2095 = vpop.f32.mrb[0].mxu0
        %v2096 = vadd.f32 %v314, %v2095
        %2097 = vdwg.mxu0
        %v2098 = vmax.f32 %v2076, 0.0
        %v2099 = vmax.f32 %v2078, 0.0
        %v2100 = vmax.f32 %v2082, 0.0
        %v2101 = vmax.f32 %v2084, 0.0
        %v2102 = vmax.f32 %v2088, 0.0
        %v2103 = vmax.f32 %v2090, 0.0
        %v2104 = vmax.f32 %v2094, 0.0
        %v2105 = vmax.f32 %v2096, 0.0
        %2106 = vmatprep.subr.mxu0 %v2099
        %2107 = vmatpush1.msra.mxu0 %v2098
        %2108 = vmatprep.subr.mxu0 %v2101
        %2109 = vmatpush1.msra.mxu0 %v2100
        %2110 = vmatprep.subr.mxu0 %v2103
        %2111 = vmatpush1.msra.mxu0 %v2102
        %2112 = vmatprep.subr.mxu0 %v2105
        %2113 = vmatpush1.msra.mxu0 %v2104
        %2114 = vmatprep.subr.mxu0 0.0
        %2115 = vmatpush1.msra.mxu0 0.0
        %2116 = vmatprep.subr.mxu0 0.0
        %2117 = vmatpush1.msra.mxu0 0.0
        %2118 = vmatprep.subr.mxu0 0.0
        %2119 = vmatpush1.msra.mxu0 0.0
        %2120 = vmatprep.subr.mxu0 0.0
        %2121 = vmatpush1.msra.mxu0 0.0
        %2122 = vmatprep.subr.mxu0 0.0
        %2123 = vmatpush1.msra.mxu0 0.0
        %2124 = vmatprep.subr.mxu0 0.0
        %2125 = vmatpush1.msra.mxu0 0.0
        %2126 = vmatprep.subr.mxu0 0.0
        %2127 = vmatpush1.msra.mxu0 0.0
        %2128 = vmatprep.subr.mxu0 0.0
        %2129 = vmatpush1.msra.mxu0 0.0
        %2130 = vmatprep.subr.mxu0 0.0
        %2131 = vmatpush1.msra.mxu0 0.0
        %2132 = vmatprep.subr.mxu0 0.0
        %2133 = vmatpush1.msra.mxu0 0.0
        %2134 = vmatprep.subr.mxu0 0.0
        %2135 = vmatpush1.msra.mxu0 0.0
        %2136 = vmatprep.subr.mxu0 0.0
        %2137 = vmatpush1.msra.mxu0 0.0
        %2138 = vmatprep.subr.mxu0 0.0
        %2139 = vmatpush1.msra.mxu0 0.0
        %2140 = vmatprep.subr.mxu0 0.0
        %2141 = vmatpush1.msra.mxu0 0.0
        %2142 = vmatprep.subr.mxu0 0.0
        %2143 = vmatpush1.msra.mxu0 0.0
        %2144 = vmatprep.subr.mxu0 0.0
        %2145 = vmatpush1.msra.mxu0 0.0
        %2146 = vmatprep.subr.mxu0 0.0
        %2147 = vmatpush1.msra.mxu0 0.0
        %2148 = vmatprep.subr.mxu0 0.0
        %2149 = vmatpush1.msra.mxu0 0.0
        %2150 = vmatprep.subr.mxu0 0.0
        %2151 = vmatpush1.msra.mxu0 0.0
        %2152 = vmatprep.subr.mxu0 0.0
        %2153 = vmatpush1.msra.mxu0 0.0
        %2154 = vmatprep.subr.mxu0 0.0
        %2155 = vmatpush1.msra.mxu0 0.0
        %2156 = vmatprep.subr.mxu0 0.0
        %2157 = vmatpush1.msra.mxu0 0.0
        %2158 = vmatprep.subr.mxu0 0.0
        %2159 = vmatpush1.msra.mxu0 0.0
        %2160 = vmatprep.subr.mxu0 0.0
        %2161 = vmatpush1.msra.mxu0 0.0
        %2162 = vmatprep.subr.mxu0 0.0
        %2163 = vmatpush1.msra.mxu0 0.0
        %2164 = vmatprep.subr.mxu0 0.0
        %2165 = vmatpush1.msra.mxu0 0.0
        %2166 = vmatprep.subr.mxu0 0.0
        %2167 = vmatpush1.msra.mxu0 0.0
        %2168 = vmatprep.subr.mxu0 0.0
        %2169 = vmatpush1.msra.mxu0 0.0
        %2170 = vmatprep.mubr.f32.mxu0 0.0
        %2171 = vmatmul.mubr.f32.gmra.mrb[0].mxu0 %v360
        %v2172 = vpop.f32.mrb[0].mxu0
        %v2173 = vadd.f32 %v323, %v2172
        %v2174 = vpop.f32.mrb[0].mxu0
        %v2175 = vadd.f32 %v323, %v2174
        %2176 = vmatprep.mubr.f32.mxu0 0.0
        %2177 = vmatmul.mubr.f32.gmra.mrb[0].mxu0 %v363
        %v2178 = vpop.f32.mrb[0].mxu0
        %v2179 = vadd.f32 %v328, %v2178
        %v2180 = vpop.f32.mrb[0].mxu0
        %v2181 = vadd.f32 %v328, %v2180
        %2182 = vmatprep.mubr.f32.mxu0 0.0
        %2183 = vmatmul.mubr.f32.gmra.mrb[0].mxu0 %v366
        %v2184 = vpop.f32.mrb[0].mxu0
        %v2185 = vadd.f32 %v333, %v2184
        %v2186 = vpop.f32.mrb[0].mxu0
        %v2187 = vadd.f32 %v333, %v2186
        %2188 = vmatprep.mubr.f32.mxu0 0.0
        %2189 = vmatmul.mubr.f32.gmra.mrb[0].mxu0 %v369
        %v2190 = vpop.f32.mrb[0].mxu0
        %v2191 = vadd.f32 %v338, %v2190
        %v2192 = vpop.f32.mrb[0].mxu0
        %v2193 = vadd.f32 %v338, %v2192
        %2194 = vdwg.mxu0
        %v2195 = vmax.f32 %v2173, 0.0
        %v2196 = vmax.f32 %v2175, 0.0
        %v2197 = vmax.f32 %v2179, 0.0
        %v2198 = vmax.f32 %v2181, 0.0
        %v2199 = vmax.f32 %v2185, 0.0
        %v2200 = vmax.f32 %v2187, 0.0
        %v2201 = vmax.f32 %v2191, 0.0
        %v2202 = vmax.f32 %v2193, 0.0
        %2203 = vmatprep.subr.mxu0 %v2196
        %2204 = vmatpush1.msra.mxu0 %v2195
        %2205 = vmatprep.subr.mxu0 %v2198
        %2206 = vmatpush1.msra.mxu0 %v2197
        %2207 = vmatprep.subr.mxu0 %v2200
        %2208 = vmatpush1.msra.mxu0 %v2199
        %2209 = vmatprep.subr.mxu0 %v2202
        %2210 = vmatpush1.msra.mxu0 %v2201
        %2211 = vmatprep.subr.mxu0 0.0
        %2212 = vmatpush1.msra.mxu0 0.0
        %2213 = vmatprep.subr.mxu0 0.0
        %2214 = vmatpush1.msra.mxu0 0.0
        %2215 = vmatprep.subr.mxu0 0.0
        %2216 = vmatpush1.msra.mxu0 0.0
        %2217 = vmatprep.subr.mxu0 0.0
        %2218 = vmatpush1.msra.mxu0 0.0
        %2219 = vmatprep.subr.mxu0 0.0
        %2220 = vmatpush1.msra.mxu0 0.0
        %2221 = vmatprep.subr.mxu0 0.0
        %2222 = vmatpush1.msra.mxu0 0.0
        %2223 = vmatprep.subr.mxu0 0.0
        %2224 = vmatpush1.msra.mxu0 0.0
        %2225 = vmatprep.subr.mxu0 0.0
        %2226 = vmatpush1.msra.mxu0 0.0
        %2227 = vmatprep.subr.mxu0 0.0
        %2228 = vmatpush1.msra.mxu0 0.0
        %2229 = vmatprep.subr.mxu0 0.0
        %2230 = vmatpush1.msra.mxu0 0.0
        %2231 = vmatprep.subr.mxu0 0.0
        %2232 = vmatpush1.msra.mxu0 0.0
        %2233 = vmatprep.subr.mxu0 0.0
        %2234 = vmatpush1.msra.mxu0 0.0
        %2235 = vmatprep.subr.mxu0 0.0
        %2236 = vmatpush1.msra.mxu0 0.0
        %2237 = vmatprep.subr.mxu0 0.0
        %2238 = vmatpush1.msra.mxu0 0.0
        %2239 = vmatprep.subr.mxu0 0.0
        %2240 = vmatpush1.msra.mxu0 0.0
        %2241 = vmatprep.subr.mxu0 0.0
        %2242 = vmatpush1.msra.mxu0 0.0
        %2243 = vmatprep.subr.mxu0 0.0
        %2244 = vmatpush1.msra.mxu0 0.0
        %2245 = vmatprep.subr.mxu0 0.0
        %2246 = vmatpush1.msra.mxu0 0.0
        %2247 = vmatprep.subr.mxu0 0.0
        %2248 = vmatpush1.msra.mxu0 0.0
        %2249 = vmatprep.subr.mxu0 0.0
        %2250 = vmatpush1.msra.mxu0 0.0
        %2251 = vmatprep.subr.mxu0 0.0
        %2252 = vmatpush1.msra.mxu0 0.0
        %2253 = vmatprep.subr.mxu0 0.0
        %2254 = vmatpush1.msra.mxu0 0.0
        %2255 = vmatprep.subr.mxu0 0.0
        %2256 = vmatpush1.msra.mxu0 0.0
        %2257 = vmatprep.subr.mxu0 0.0
        %2258 = vmatpush1.msra.mxu0 0.0
        %2259 = vmatprep.subr.mxu0 0.0
        %2260 = vmatpush1.msra.mxu0 0.0
        %2261 = vmatprep.subr.mxu0 0.0
        %2262 = vmatpush1.msra.mxu0 0.0
        %2263 = vmatprep.subr.mxu0 0.0
        %2264 = vmatpush1.msra.mxu0 0.0
        %2265 = vmatprep.subr.mxu0 0.0
        %2266 = vmatpush1.msra.mxu0 0.0
        %2267 = vmatprep.mubr.f32.mxu0 0.0
        %2268 = vmatmul.mubr.f32.gmra.mrb[0].mxu0 %v469
        %v2269 = vpop.f32.mrb[0].mxu0
        %v2270 = vadd.f32 %v345, %v2269
        %v2271 = vpop.f32.mrb[0].mxu0
        %v2272 = vadd.f32 %v345, %v2271
        %2273 = vmatprep.mubr.f32.mxu0 0.0
        %2274 = vmatmul.mubr.f32.gmra.mrb[0].mxu0 %v472
        %v2275 = vpop.f32.mrb[0].mxu0
        %v2276 = vadd.f32 %v350, %v2275
        %v2277 = vpop.f32.mrb[0].mxu0
        %v2278 = vadd.f32 %v350, %v2277
        %2279 = vdwg.mxu0
        %v2280 = vmax.f32 %v2276, -5.0
        %v2281 = vmax.f32 %v2278, -5.0
        %v2282 = vmin.f32 %v2280, 3.0
        %v2283 = vmin.f32 %v2281, 3.0
        %v2284 = vmul.f32 %v2282, 1.442695
        %v2285 = vpow.pop %v2284
        %v2286 = vmul.f32 %v2283, 1.442695
        %v2287 = vpow.pop %v2286
        %v2288 = vmul.f32 %v280, %v2285
        %v2289 = vmul.f32 %v281, %v2287
        %v2290 = vadd.f32 %v2288, %v2270
        %v2291 = vadd.f32 %v2289, %v2272
        %vm2292 = vcmp.eq.s32.totalorder %v353, 6
        %v2293 = vsel %vm2292, %v2290, %v2007
        %v2294 = vsel %vm2292, %v2291, %v2008
        %2295 = vmatprep.subr.mxu0 %v2294
        %2296 = vmatpush1.msra.mxu0 %v2293
        %2297 = vmatprep.subr.mxu0 0.0
        %2298 = vmatpush1.msra.mxu0 0.0
        %2299 = vmatprep.subr.mxu0 0.0
        %2300 = vmatpush1.msra.mxu0 0.0
        %2301 = vmatprep.subr.mxu0 0.0
        %2302 = vmatpush1.msra.mxu0 0.0
        %2303 = vmatprep.subr.mxu0 0.0
        %2304 = vmatpush1.msra.mxu0 0.0
        %2305 = vmatprep.subr.mxu0 0.0
        %2306 = vmatpush1.msra.mxu0 0.0
        %2307 = vmatprep.subr.mxu0 0.0
        %2308 = vmatpush1.msra.mxu0 0.0
        %2309 = vmatprep.subr.mxu0 0.0
        %2310 = vmatpush1.msra.mxu0 0.0
        %2311 = vmatprep.subr.mxu0 0.0
        %2312 = vmatpush1.msra.mxu0 0.0
        %2313 = vmatprep.subr.mxu0 0.0
        %2314 = vmatpush1.msra.mxu0 0.0
        %2315 = vmatprep.subr.mxu0 0.0
        %2316 = vmatpush1.msra.mxu0 0.0
        %2317 = vmatprep.subr.mxu0 0.0
        %2318 = vmatpush1.msra.mxu0 0.0
        %2319 = vmatprep.subr.mxu0 0.0
        %2320 = vmatpush1.msra.mxu0 0.0
        %2321 = vmatprep.subr.mxu0 0.0
        %2322 = vmatpush1.msra.mxu0 0.0
        %2323 = vmatprep.subr.mxu0 0.0
        %2324 = vmatpush1.msra.mxu0 0.0
        %2325 = vmatprep.subr.mxu0 0.0
        %2326 = vmatpush1.msra.mxu0 0.0
        %2327 = vmatprep.subr.mxu0 0.0
        %2328 = vmatpush1.msra.mxu0 0.0
        %2329 = vmatprep.subr.mxu0 0.0
        %2330 = vmatpush1.msra.mxu0 0.0
        %2331 = vmatprep.subr.mxu0 0.0
        %2332 = vmatpush1.msra.mxu0 0.0
        %2333 = vmatprep.subr.mxu0 0.0
        %2334 = vmatpush1.msra.mxu0 0.0
        %2335 = vmatprep.subr.mxu0 0.0
        %2336 = vmatpush1.msra.mxu0 0.0
        %2337 = vmatprep.subr.mxu0 0.0
        %2338 = vmatpush1.msra.mxu0 0.0
        %2339 = vmatprep.subr.mxu0 0.0
        %2340 = vmatpush1.msra.mxu0 0.0
        %2341 = vmatprep.subr.mxu0 0.0
        %2342 = vmatpush1.msra.mxu0 0.0
        %2343 = vmatprep.subr.mxu0 0.0
        %2344 = vmatpush1.msra.mxu0 0.0
        %2345 = vmatprep.subr.mxu0 0.0
        %2346 = vmatpush1.msra.mxu0 0.0
        %2347 = vmatprep.subr.mxu0 0.0
        %2348 = vmatpush1.msra.mxu0 0.0
        %2349 = vmatprep.subr.mxu0 0.0
        %2350 = vmatpush1.msra.mxu0 0.0
        %2351 = vmatprep.subr.mxu0 0.0
        %2352 = vmatpush1.msra.mxu0 0.0
        %2353 = vmatprep.subr.mxu0 0.0
        %2354 = vmatpush1.msra.mxu0 0.0
        %2355 = vmatprep.subr.mxu0 0.0
        %2356 = vmatpush1.msra.mxu0 0.0
        %2357 = vmatprep.subr.mxu0 0.0
        %2358 = vmatpush1.msra.mxu0 0.0
        %2359 = vmatprep.mubr.f32.mxu0 0.0
        %2360 = vmatmul.mubr.f32.gmra.mrb[0].mxu0 %v568
        %v2361 = vpop.f32.mrb[0].mxu0
        %v2362 = vadd.f32 %v299, %v2361
        %v2363 = vpop.f32.mrb[0].mxu0
        %v2364 = vadd.f32 %v299, %v2363
        %2365 = vmatprep.mubr.f32.mxu0 0.0
        %2366 = vmatmul.mubr.f32.gmra.mrb[0].mxu0 %v571
        %v2367 = vpop.f32.mrb[0].mxu0
        %v2368 = vadd.f32 %v304, %v2367
        %v2369 = vpop.f32.mrb[0].mxu0
        %v2370 = vadd.f32 %v304, %v2369
        %2371 = vmatprep.mubr.f32.mxu0 0.0
        %2372 = vmatmul.mubr.f32.gmra.mrb[0].mxu0 %v574
        %v2373 = vpop.f32.mrb[0].mxu0
        %v2374 = vadd.f32 %v309, %v2373
        %v2375 = vpop.f32.mrb[0].mxu0
        %v2376 = vadd.f32 %v309, %v2375
        %2377 = vmatprep.mubr.f32.mxu0 0.0
        %2378 = vmatmul.mubr.f32.gmra.mrb[0].mxu0 %v577
        %v2379 = vpop.f32.mrb[0].mxu0
        %v2380 = vadd.f32 %v314, %v2379
        %v2381 = vpop.f32.mrb[0].mxu0
        %v2382 = vadd.f32 %v314, %v2381
        %2383 = vdwg.mxu0
        %v2384 = vmax.f32 %v2362, 0.0
        %v2385 = vmax.f32 %v2364, 0.0
        %v2386 = vmax.f32 %v2368, 0.0
        %v2387 = vmax.f32 %v2370, 0.0
        %v2388 = vmax.f32 %v2374, 0.0
        %v2389 = vmax.f32 %v2376, 0.0
        %v2390 = vmax.f32 %v2380, 0.0
        %v2391 = vmax.f32 %v2382, 0.0
        %2392 = vmatprep.subr.mxu0 %v2385
        %2393 = vmatpush1.msra.mxu0 %v2384
        %2394 = vmatprep.subr.mxu0 %v2387
        %2395 = vmatpush1.msra.mxu0 %v2386
        %2396 = vmatprep.subr.mxu0 %v2389
        %2397 = vmatpush1.msra.mxu0 %v2388
        %2398 = vmatprep.subr.mxu0 %v2391
        %2399 = vmatpush1.msra.mxu0 %v2390
        %2400 = vmatprep.subr.mxu0 0.0
        %2401 = vmatpush1.msra.mxu0 0.0
        %2402 = vmatprep.subr.mxu0 0.0
        %2403 = vmatpush1.msra.mxu0 0.0
        %2404 = vmatprep.subr.mxu0 0.0
        %2405 = vmatpush1.msra.mxu0 0.0
        %2406 = vmatprep.subr.mxu0 0.0
        %2407 = vmatpush1.msra.mxu0 0.0
        %2408 = vmatprep.subr.mxu0 0.0
        %2409 = vmatpush1.msra.mxu0 0.0
        %2410 = vmatprep.subr.mxu0 0.0
        %2411 = vmatpush1.msra.mxu0 0.0
        %2412 = vmatprep.subr.mxu0 0.0
        %2413 = vmatpush1.msra.mxu0 0.0
        %2414 = vmatprep.subr.mxu0 0.0
        %2415 = vmatpush1.msra.mxu0 0.0
        %2416 = vmatprep.subr.mxu0 0.0
        %2417 = vmatpush1.msra.mxu0 0.0
        %2418 = vmatprep.subr.mxu0 0.0
        %2419 = vmatpush1.msra.mxu0 0.0
        %2420 = vmatprep.subr.mxu0 0.0
        %2421 = vmatpush1.msra.mxu0 0.0
        %2422 = vmatprep.subr.mxu0 0.0
        %2423 = vmatpush1.msra.mxu0 0.0
        %2424 = vmatprep.subr.mxu0 0.0
        %2425 = vmatpush1.msra.mxu0 0.0
        %2426 = vmatprep.subr.mxu0 0.0
        %2427 = vmatpush1.msra.mxu0 0.0
        %2428 = vmatprep.subr.mxu0 0.0
        %2429 = vmatpush1.msra.mxu0 0.0
        %2430 = vmatprep.subr.mxu0 0.0
        %2431 = vmatpush1.msra.mxu0 0.0
        %2432 = vmatprep.subr.mxu0 0.0
        %2433 = vmatpush1.msra.mxu0 0.0
        %2434 = vmatprep.subr.mxu0 0.0
        %2435 = vmatpush1.msra.mxu0 0.0
        %2436 = vmatprep.subr.mxu0 0.0
        %2437 = vmatpush1.msra.mxu0 0.0
        %2438 = vmatprep.subr.mxu0 0.0
        %2439 = vmatpush1.msra.mxu0 0.0
        %2440 = vmatprep.subr.mxu0 0.0
        %2441 = vmatpush1.msra.mxu0 0.0
        %2442 = vmatprep.subr.mxu0 0.0
        %2443 = vmatpush1.msra.mxu0 0.0
        %2444 = vmatprep.subr.mxu0 0.0
        %2445 = vmatpush1.msra.mxu0 0.0
        %2446 = vmatprep.subr.mxu0 0.0
        %2447 = vmatpush1.msra.mxu0 0.0
        %2448 = vmatprep.subr.mxu0 0.0
        %2449 = vmatpush1.msra.mxu0 0.0
        %2450 = vmatprep.subr.mxu0 0.0
        %2451 = vmatpush1.msra.mxu0 0.0
        %2452 = vmatprep.subr.mxu0 0.0
        %2453 = vmatpush1.msra.mxu0 0.0
        %2454 = vmatprep.subr.mxu0 0.0
        %2455 = vmatpush1.msra.mxu0 0.0
        %2456 = vmatprep.mubr.f32.mxu0 0.0
        %2457 = vmatmul.mubr.f32.gmra.mrb[0].mxu0 %v360
        %v2458 = vpop.f32.mrb[0].mxu0
        %v2459 = vadd.f32 %v323, %v2458
        %v2460 = vpop.f32.mrb[0].mxu0
        %v2461 = vadd.f32 %v323, %v2460
        %2462 = vmatprep.mubr.f32.mxu0 0.0
        %2463 = vmatmul.mubr.f32.gmra.mrb[0].mxu0 %v363
        %v2464 = vpop.f32.mrb[0].mxu0
        %v2465 = vadd.f32 %v328, %v2464
        %v2466 = vpop.f32.mrb[0].mxu0
        %v2467 = vadd.f32 %v328, %v2466
        %2468 = vmatprep.mubr.f32.mxu0 0.0
        %2469 = vmatmul.mubr.f32.gmra.mrb[0].mxu0 %v366
        %v2470 = vpop.f32.mrb[0].mxu0
        %v2471 = vadd.f32 %v333, %v2470
        %v2472 = vpop.f32.mrb[0].mxu0
        %v2473 = vadd.f32 %v333, %v2472
        %2474 = vmatprep.mubr.f32.mxu0 0.0
        %2475 = vmatmul.mubr.f32.gmra.mrb[0].mxu0 %v369
        %v2476 = vpop.f32.mrb[0].mxu0
        %v2477 = vadd.f32 %v338, %v2476
        %v2478 = vpop.f32.mrb[0].mxu0
        %v2479 = vadd.f32 %v338, %v2478
        %2480 = vdwg.mxu0
        %v2481 = vmax.f32 %v2459, 0.0
        %v2482 = vmax.f32 %v2461, 0.0
        %v2483 = vmax.f32 %v2465, 0.0
        %v2484 = vmax.f32 %v2467, 0.0
        %v2485 = vmax.f32 %v2471, 0.0
        %v2486 = vmax.f32 %v2473, 0.0
        %v2487 = vmax.f32 %v2477, 0.0
        %v2488 = vmax.f32 %v2479, 0.0
        %2489 = vmatprep.subr.mxu0 %v2482
        %2490 = vmatpush1.msra.mxu0 %v2481
        %2491 = vmatprep.subr.mxu0 %v2484
        %2492 = vmatpush1.msra.mxu0 %v2483
        %2493 = vmatprep.subr.mxu0 %v2486
        %2494 = vmatpush1.msra.mxu0 %v2485
        %2495 = vmatprep.subr.mxu0 %v2488
        %2496 = vmatpush1.msra.mxu0 %v2487
        %2497 = vmatprep.subr.mxu0 0.0
        %2498 = vmatpush1.msra.mxu0 0.0
        %2499 = vmatprep.subr.mxu0 0.0
        %2500 = vmatpush1.msra.mxu0 0.0
        %2501 = vmatprep.subr.mxu0 0.0
        %2502 = vmatpush1.msra.mxu0 0.0
        %2503 = vmatprep.subr.mxu0 0.0
        %2504 = vmatpush1.msra.mxu0 0.0
        %2505 = vmatprep.subr.mxu0 0.0
        %2506 = vmatpush1.msra.mxu0 0.0
        %2507 = vmatprep.subr.mxu0 0.0
        %2508 = vmatpush1.msra.mxu0 0.0
        %2509 = vmatprep.subr.mxu0 0.0
        %2510 = vmatpush1.msra.mxu0 0.0
        %2511 = vmatprep.subr.mxu0 0.0
        %2512 = vmatpush1.msra.mxu0 0.0
        %2513 = vmatprep.subr.mxu0 0.0
        %2514 = vmatpush1.msra.mxu0 0.0
        %2515 = vmatprep.subr.mxu0 0.0
        %2516 = vmatpush1.msra.mxu0 0.0
        %2517 = vmatprep.subr.mxu0 0.0
        %2518 = vmatpush1.msra.mxu0 0.0
        %2519 = vmatprep.subr.mxu0 0.0
        %2520 = vmatpush1.msra.mxu0 0.0
        %2521 = vmatprep.subr.mxu0 0.0
        %2522 = vmatpush1.msra.mxu0 0.0
        %2523 = vmatprep.subr.mxu0 0.0
        %2524 = vmatpush1.msra.mxu0 0.0
        %2525 = vmatprep.subr.mxu0 0.0
        %2526 = vmatpush1.msra.mxu0 0.0
        %2527 = vmatprep.subr.mxu0 0.0
        %2528 = vmatpush1.msra.mxu0 0.0
        %2529 = vmatprep.subr.mxu0 0.0
        %2530 = vmatpush1.msra.mxu0 0.0
        %2531 = vmatprep.subr.mxu0 0.0
        %2532 = vmatpush1.msra.mxu0 0.0
        %2533 = vmatprep.subr.mxu0 0.0
        %2534 = vmatpush1.msra.mxu0 0.0
        %2535 = vmatprep.subr.mxu0 0.0
        %2536 = vmatpush1.msra.mxu0 0.0
        %2537 = vmatprep.subr.mxu0 0.0
        %2538 = vmatpush1.msra.mxu0 0.0
        %2539 = vmatprep.subr.mxu0 0.0
        %2540 = vmatpush1.msra.mxu0 0.0
        %2541 = vmatprep.subr.mxu0 0.0
        %2542 = vmatpush1.msra.mxu0 0.0
        %2543 = vmatprep.subr.mxu0 0.0
        %2544 = vmatpush1.msra.mxu0 0.0
        %2545 = vmatprep.subr.mxu0 0.0
        %2546 = vmatpush1.msra.mxu0 0.0
        %2547 = vmatprep.subr.mxu0 0.0
        %2548 = vmatpush1.msra.mxu0 0.0
        %2549 = vmatprep.subr.mxu0 0.0
        %2550 = vmatpush1.msra.mxu0 0.0
        %2551 = vmatprep.subr.mxu0 0.0
        %2552 = vmatpush1.msra.mxu0 0.0
        %2553 = vmatprep.mubr.f32.mxu0 0.0
        %2554 = vmatmul.mubr.f32.gmra.mrb[0].mxu0 %v469
        %v2555 = vpop.f32.mrb[0].mxu0
        %v2556 = vadd.f32 %v345, %v2555
        %v2557 = vpop.f32.mrb[0].mxu0
        %v2558 = vadd.f32 %v345, %v2557
        %2559 = vmatprep.mubr.f32.mxu0 0.0
        %2560 = vmatmul.mubr.f32.gmra.mrb[0].mxu0 %v472
        %v2561 = vpop.f32.mrb[0].mxu0
        %v2562 = vadd.f32 %v350, %v2561
        %v2563 = vpop.f32.mrb[0].mxu0
        %v2564 = vadd.f32 %v350, %v2563
        %2565 = vdwg.mxu0
        %v2566 = vmax.f32 %v2562, -5.0
        %v2567 = vmax.f32 %v2564, -5.0
        %v2568 = vmin.f32 %v2566, 3.0
        %v2569 = vmin.f32 %v2567, 3.0
        %v2570 = vmul.f32 %v2568, 1.442695
        %v2571 = vpow.pop %v2570
        %v2572 = vmul.f32 %v2569, 1.442695
        %v2573 = vpow.pop %v2572
        %v2574 = vmul.f32 %v280, %v2571
        %v2575 = vmul.f32 %v281, %v2573
        %v2576 = vadd.f32 %v2574, %v2556
        %v2577 = vadd.f32 %v2575, %v2558
        %vm2578 = vcmp.eq.s32.totalorder %v353, 7
        %v2579 = vsel %vm2578, %v2576, %v2293
        %v2580 = vsel %vm2578, %v2577, %v2294
        %2581 = vst [vmem:[%s272] sm:$0xff] %v2579
        %2582 = vst [vmem:[%s272 + $0x8] sm:$0xff] %v2580
        %s2583 = sand.u32 %s181, 1
        %s2584 = scalar_lea.sflag [#allocation3], %s2583
        %s2585 = sand.u32 %s181, 1
        %s2586 = smul.addr %s2585, 16
        %s2587 = scalar_lea.vmem [#allocation2], %s2586
        // Predicated region
        $region49: #{tpu_custom_call.1} parent=47 // pred_check
          %p2588 = pneg %p191
        $region50: #{tpu_custom_call.1} parent=47 // pred_check_branch
          %2590 = sbr.rel (%p2588) target = $region52
        $region51: #{tpu_custom_call.1} parent=47 // pred_region
          %s2591 = smul.u32 2, %s21
          %s2593 = ssub.s32 256, 256
          %2594 = vsyncadd %s2584, %s2593
          %s2595 = smul.addr %s2591, 128
          %s2596 = scalar_lea.hbm %s7, %s2595
          %s2598 = sshll.u32 %s2587, 4
          %s2599 = int_to_ptr.vmem [resolvable:$true] %s2598
          %2601 = dma.vmem_to_hbm [thread:$0]  %s2599, 256, %s2596, %s2584
        $region52: #{tpu_custom_call.1} parent=47 // pred_fallthru
          _
      $region48: #{tpu_custom_call.1} parent=5 // pred_fallthru
        _
      %p2602 = scmp.le.s32.totalorder 2, %s16
      // Predicated region
      $region53: #{tpu_custom_call.1} parent=5 // pred_check
        %p2603 = pneg %p2602
      $region54: #{tpu_custom_call.1} parent=5 // pred_check_branch
        %2605 = sbr.rel (%p2603) target = $region56
      $region55: #{tpu_custom_call.1} parent=5 // pred_region
        %s2606 = ssub.s32 %s16, 2
        // Predicated region
        $region57: #{tpu_custom_call.1} parent=55 // pred_check
          %p2607 = pneg %p197
        $region58: #{tpu_custom_call.1} parent=55 // pred_check_branch
          %2609 = sbr.rel (%p2607) target = $region60
        $region59: #{tpu_custom_call.1} parent=55 // pred_region
          %s2610 = sand.u32 %s182, 1
          %s2611 = scalar_lea.sflag [#allocation3], %s2610
          %s2612 = sand.u32 %s182, 1
          %s2613 = smul.addr %s2612, 16
          %s2614 = scalar_lea.vmem [#allocation2], %s2613
          %2615 = dma.done %s2611, 256
        $region60: #{tpu_custom_call.1} parent=55 // pred_fallthru
          _
      $region56: #{tpu_custom_call.1} parent=5 // pred_fallthru
        _
    $region6: #{tpu_custom_call.1} parent=1 // loop_footer
      %s20 = sadd.s32 1, %s16
    $region7: #{tpu_custom_call.1} parent=1 // loop_footer_branch
      %15 = sbr.rel target = $region3
    $region8: #{tpu_custom_call.1} parent=1 // loop_exit
      _
    %2616 = vsyncpa [#allocation3], 1
    %s2617 = scalar_lea.sflag [#allocation3], 1
    %2618 = vsyncpa %s2617, 1

</llo_original>
